<compile_context>
chip_gen: v7x
topology: tpu7x:2x2x1
jax: 0.10.0
libtpu: 0.0.40
codegen_flags: <defaults>
</compile_context>

<pallas_src>
import numpy as np
import jax
import jax.numpy as jnp
from jax.experimental import pallas as pl
from jax.experimental.pallas import tpu as pltpu

HIDDEN = 512
N_CLASSES = 3
LANE = 128
SUBLANE = 8


def classifier_kernel(x_ref, w1_ref, b1_ref, w2_ref, b2_ref, w3_ref, b3_ref,
                      out_ref):
    # Fused MLP forward on one batch tile:
    #   out = tanh(tanh(x @ W1 + b1) @ W2 + b2) @ W3 + b3
    h1 = jnp.tanh(
        jnp.dot(x_ref[...], w1_ref[...], preferred_element_type=jnp.float32)
        + b1_ref[...])
    h2 = jnp.tanh(
        jnp.dot(h1, w2_ref[...], preferred_element_type=jnp.float32)
        + b2_ref[...])
    out_ref[...] = (
        jnp.dot(h2, w3_ref[...], preferred_element_type=jnp.float32)
        + b3_ref[...])


def _round_up(n, m):
    return ((n + m - 1) // m) * m


def classifier_forward(encoded_embeds, params, *, max_block_b=128):
    """encoded_embeds: [B, 4*sentence_dim] float32 -> logits [B, 3]."""
    x = encoded_embeds.astype(jnp.float32)
    B, Din = x.shape
    H = params["w1"].shape[1]
    Cout = params["w3"].shape[1]

    Dp = _round_up(Din, LANE)     # lane-align the first contraction dim
    Cp = _round_up(Cout, LANE)    # lane-dense output -> unmasked stores
    Bp = _round_up(B, SUBLANE)
    tb = min(max_block_b, Bp)     # batch tile (sublane-aligned)
    Bp = _round_up(Bp, tb)

    # Zero-padding: extra x columns hit zero W1 rows, extra W3 columns / b3
    # entries produce logits we slice away, extra batch rows are discarded.
    x_p = jnp.zeros((Bp, Dp), jnp.float32).at[:B, :Din].set(x)
    w1_p = jnp.zeros((Dp, H), jnp.float32).at[:Din, :].set(params["w1"])
    w3_p = jnp.zeros((H, Cp), jnp.float32).at[:, :Cout].set(params["w3"])
    b1 = params["b1"].reshape(1, H).astype(jnp.float32)
    b2 = params["b2"].reshape(1, H).astype(jnp.float32)
    b3_p = jnp.zeros((1, Cp), jnp.float32).at[:, :Cout].set(
        params["b3"].reshape(1, Cout))

    grid = (Bp // tb,)
    out = pl.pallas_call(
        classifier_kernel,
        out_shape=jax.ShapeDtypeStruct((Bp, Cp), jnp.float32),
        grid_spec=pltpu.PrefetchScalarGridSpec(
            num_scalar_prefetch=0,
            grid=grid,
            in_specs=[
                pl.BlockSpec((tb, Dp), lambda i: (i, 0)),   # x batch tile
                pl.BlockSpec((Dp, H), lambda i: (0, 0)),    # W1 (resident)
                pl.BlockSpec((1, H), lambda i: (0, 0)),     # b1
                pl.BlockSpec((H, H), lambda i: (0, 0)),     # W2 (resident)
                pl.BlockSpec((1, H), lambda i: (0, 0)),     # b2
                pl.BlockSpec((H, Cp), lambda i: (0, 0)),    # W3 (resident)
                pl.BlockSpec((1, Cp), lambda i: (0, 0)),    # b3
            ],
            out_specs=pl.BlockSpec((tb, Cp), lambda i: (i, 0)),
        ),
        compiler_params=pltpu.CompilerParams(
            dimension_semantics=("parallel",)),
    )(x_p, w1_p, b1, params["w2"].astype(jnp.float32), b2, w3_p, b3_p)

    return out[:B, :Cout]


def init_params(key, sentence_dim):
    """PyTorch nn.Linear default init: U(-1/sqrt(fan_in), 1/sqrt(fan_in)).
    Weights are stored transposed ([in, out]) relative to PyTorch's [out, in]."""
    Din = 4 * sentence_dim
    ks = jax.random.split(key, 6)

    def lin(kw, kb, fan_in, fan_out):
        s = 1.0 / float(np.sqrt(fan_in))
        w = jax.random.uniform(kw, (fan_in, fan_out), jnp.float32, -s, s)
        b = jax.random.uniform(kb, (fan_out,), jnp.float32, -s, s)
        return w, b

    w1, b1 = lin(ks[0], ks[1], Din, HIDDEN)
    w2, b2 = lin(ks[2], ks[3], HIDDEN, HIDDEN)
    w3, b3 = lin(ks[4], ks[5], HIDDEN, N_CLASSES)
    return dict(w1=w1, b1=b1, w2=w2, b2=b2, w3=w3, b3=b3)


def reference(encoded_embeds, p):
    """Pure-JAX reference with identical semantics to Classifier.forward."""
    h1 = jnp.tanh(encoded_embeds @ p["w1"] + p["b1"])
    h2 = jnp.tanh(h1 @ p["w2"] + p["b2"])
    return h2 @ p["w3"] + p["b3"]


if __name__ == "__main__":
    # encoder_type='awe' -> input dim 4*300 = 1200; small batch for the demo.
    B, sentence_dim = 8, 300

    key = jax.random.PRNGKey(0)
    kx, kp = jax.random.split(key)
    params = init_params(kp, sentence_dim)
    encoded_embeds = jax.random.normal(kx, (B, 4 * sentence_dim), jnp.float32)

    out = classifier_forward(encoded_embeds, params)
    out = jax.block_until_ready(out)
    assert out.shape == (B, N_CLASSES)

    ref = reference(encoded_embeds, params)
    np.testing.assert_allclose(np.asarray(out), np.asarray(ref),
                               rtol=2e-2, atol=2e-2)
    print("KERNEL_OK")
</pallas_src>

<mosaic_0001>
module attributes {stable_mosaic.version = 11 : i64} {
  func.func @classifier_kernel(%arg0: i32, %arg1: memref<8x1280xf32, #tpu.memory_space<vmem>>, %arg2: memref<1280x512xf32, #tpu.memory_space<vmem>>, %arg3: memref<1x512xf32, #tpu.memory_space<vmem>>, %arg4: memref<512x512xf32, #tpu.memory_space<vmem>>, %arg5: memref<1x512xf32, #tpu.memory_space<vmem>>, %arg6: memref<512x128xf32, #tpu.memory_space<vmem>>, %arg7: memref<1x128xf32, #tpu.memory_space<vmem>>, %arg8: memref<8x128xf32, #tpu.memory_space<vmem>>) attributes {dimension_semantics = [#tpu.dimension_semantics<parallel>], iteration_bounds = array<i64: 1>, scalar_prefetch = 0 : i64, scratch_operands = 0 : i64, tpu.core_type = #tpu.core_type<tc>, window_params = [{transform_indices = @transform_0, window_bounds = array<i64: 8, 1280>}, {pipeline_mode = #tpu.pipeline_mode<synchronous>, transform_indices = @transform_1, window_bounds = array<i64: 1280, 512>}, {pipeline_mode = #tpu.pipeline_mode<synchronous>, transform_indices = @transform_2, window_bounds = array<i64: 1, 512>}, {pipeline_mode = #tpu.pipeline_mode<synchronous>, transform_indices = @transform_3, window_bounds = array<i64: 512, 512>}, {pipeline_mode = #tpu.pipeline_mode<synchronous>, transform_indices = @transform_4, window_bounds = array<i64: 1, 512>}, {pipeline_mode = #tpu.pipeline_mode<synchronous>, transform_indices = @transform_5, window_bounds = array<i64: 512, 128>}, {pipeline_mode = #tpu.pipeline_mode<synchronous>, transform_indices = @transform_6, window_bounds = array<i64: 1, 128>}, {transform_indices = @transform_7, window_bounds = array<i64: 8, 128>}]} {
    %c0 = arith.constant 0 : index
    %c0_0 = arith.constant 0 : index
    %0 = vector.load %arg1[%c0, %c0_0] : memref<8x1280xf32, #tpu.memory_space<vmem>>, vector<8x1280xf32>
    %c0_1 = arith.constant 0 : index
    %c0_2 = arith.constant 0 : index
    %1 = vector.load %arg2[%c0_1, %c0_2] : memref<1280x512xf32, #tpu.memory_space<vmem>>, vector<1280x512xf32>
    %cst = arith.constant dense<0.000000e+00> : vector<8x512xf32>
    %2 = tpu.matmul %0, %1, %cst {dimension_numbers = #tpu.dot_dimension_numbers<[1], [0], [0], [1], [0, 0, 1, 1], [], []>} : vector<8x1280xf32>, vector<1280x512xf32>, vector<8x512xf32> -> vector<8x512xf32>
    %c0_3 = arith.constant 0 : index
    %c0_4 = arith.constant 0 : index
    %3 = vector.load %arg3[%c0_3, %c0_4] : memref<1x512xf32, #tpu.memory_space<vmem>>, vector<1x512xf32>
    %4 = vector.broadcast %3 : vector<1x512xf32> to vector<8x512xf32>
    %5 = arith.addf %2, %4 : vector<8x512xf32>
    %6 = math.tanh %5 : vector<8x512xf32>
    %c0_5 = arith.constant 0 : index
    %c0_6 = arith.constant 0 : index
    %7 = vector.load %arg4[%c0_5, %c0_6] : memref<512x512xf32, #tpu.memory_space<vmem>>, vector<512x512xf32>
    %cst_7 = arith.constant dense<0.000000e+00> : vector<8x512xf32>
    %8 = tpu.matmul %6, %7, %cst_7 {dimension_numbers = #tpu.dot_dimension_numbers<[1], [0], [0], [1], [0, 0, 1, 1], [], []>} : vector<8x512xf32>, vector<512x512xf32>, vector<8x512xf32> -> vector<8x512xf32>
    %c0_8 = arith.constant 0 : index
    %c0_9 = arith.constant 0 : index
    %9 = vector.load %arg5[%c0_8, %c0_9] : memref<1x512xf32, #tpu.memory_space<vmem>>, vector<1x512xf32>
    %10 = vector.broadcast %9 : vector<1x512xf32> to vector<8x512xf32>
    %11 = arith.addf %8, %10 : vector<8x512xf32>
    %12 = math.tanh %11 : vector<8x512xf32>
    %c0_10 = arith.constant 0 : index
    %c0_11 = arith.constant 0 : index
    %13 = vector.load %arg6[%c0_10, %c0_11] : memref<512x128xf32, #tpu.memory_space<vmem>>, vector<512x128xf32>
    %cst_12 = arith.constant dense<0.000000e+00> : vector<8x128xf32>
    %14 = tpu.matmul %12, %13, %cst_12 {dimension_numbers = #tpu.dot_dimension_numbers<[1], [0], [0], [1], [0, 0, 1, 1], [], []>} : vector<8x512xf32>, vector<512x128xf32>, vector<8x128xf32> -> vector<8x128xf32>
    %c0_13 = arith.constant 0 : index
    %c0_14 = arith.constant 0 : index
    %15 = vector.load %arg7[%c0_13, %c0_14] : memref<1x128xf32, #tpu.memory_space<vmem>>, vector<1x128xf32>
    %16 = vector.broadcast %15 : vector<1x128xf32> to vector<8x128xf32>
    %17 = arith.addf %14, %16 : vector<8x128xf32>
    %c0_15 = arith.constant 0 : index
    %c0_16 = arith.constant 0 : index
    %18 = vector.load %arg8[%c0_15, %c0_16] : memref<8x128xf32, #tpu.memory_space<vmem>>, vector<8x128xf32>
    tpu.vector_store %arg8[%c0_15, %c0_16], %17 {strides = array<i32>} : memref<8x128xf32, #tpu.memory_space<vmem>>, vector<8x128xf32>,
    return
  }
  func.func @transform_0(%arg0: i32) -> (i32, i32) {
    %c0_i32 = arith.constant 0 : i32
    %c0_i32_0 = arith.constant 0 : i32
    return %arg0, %c0_i32 : i32, i32
  }
  func.func @transform_1(%arg0: i32) -> (i32, i32) {
    %c0_i32 = arith.constant 0 : i32
    %c0_i32_0 = arith.constant 0 : i32
    %c0_i32_1 = arith.constant 0 : i32
    return %c0_i32, %c0_i32_0 : i32, i32
  }
  func.func @transform_2(%arg0: i32) -> (i32, i32) {
    %c0_i32 = arith.constant 0 : i32
    %c0_i32_0 = arith.constant 0 : i32
    %c0_i32_1 = arith.constant 0 : i32
    return %c0_i32, %c0_i32_0 : i32, i32
  }
  func.func @transform_3(%arg0: i32) -> (i32, i32) {
    %c0_i32 = arith.constant 0 : i32
    %c0_i32_0 = arith.constant 0 : i32
    %c0_i32_1 = arith.constant 0 : i32
    return %c0_i32, %c0_i32_0 : i32, i32
  }
  func.func @transform_4(%arg0: i32) -> (i32, i32) {
    %c0_i32 = arith.constant 0 : i32
    %c0_i32_0 = arith.constant 0 : i32
    %c0_i32_1 = arith.constant 0 : i32
    return %c0_i32, %c0_i32_0 : i32, i32
  }
  func.func @transform_5(%arg0: i32) -> (i32, i32) {
    %c0_i32 = arith.constant 0 : i32
    %c0_i32_0 = arith.constant 0 : i32
    %c0_i32_1 = arith.constant 0 : i32
    return %c0_i32, %c0_i32_0 : i32, i32
  }
  func.func @transform_6(%arg0: i32) -> (i32, i32) {
    %c0_i32 = arith.constant 0 : i32
    %c0_i32_0 = arith.constant 0 : i32
    %c0_i32_1 = arith.constant 0 : i32
    return %c0_i32, %c0_i32_0 : i32, i32
  }
  func.func @transform_7(%arg0: i32) -> (i32, i32) {
    %c0_i32 = arith.constant 0 : i32
    %c0_i32_0 = arith.constant 0 : i32
    return %arg0, %c0_i32 : i32, i32
  }
}

</mosaic_0001>

<llo_original>
// kernel: tpu_custom_call.1
$region0: #{tpu_custom_call.1}
  #allocation0 [shape = 'u32[]', space=smem, size = 0x4, offset = 0x4, fixed_abs, tag = 'smem constant byte address 0x4 - core index']
  #allocation1 [shape = 'u32[144,128]{1,0:T(1,128)}', space=vmem, size = 0x12000, scoped, tag = 'internal scratch']
  %s0 = inlined_call_operand.hbm [shape: f32[8,1280], index: 0, kind: input, shape index: {}]
  %s1 = inlined_call_operand.hbm [shape: f32[1280,512], index: 1, kind: input, shape index: {}]
  %s2 = inlined_call_operand.hbm [shape: f32[1,512], index: 2, kind: input, shape index: {}]
  %s3 = inlined_call_operand.hbm [shape: f32[512,512], index: 3, kind: input, shape index: {}]
  %s4 = inlined_call_operand.hbm [shape: f32[1,512], index: 4, kind: input, shape index: {}]
  %s5 = inlined_call_operand.hbm [shape: f32[512,128], index: 5, kind: input, shape index: {}]
  %s6 = inlined_call_operand.hbm [shape: f32[1,128], index: 6, kind: input, shape index: {}]
  %s7 = inlined_call_operand.hbm [shape: f32[8,128], index: 7, kind: output, shape index: {}]
  %s8 = sld [smem:[#allocation0]]
  $region66: #{tpu_custom_call.1} parent=0
    _
  %s10 = ssub.s32 1, %s8
  %s11 = scalar_select 0, %s10, %s8
  $region1: #{tpu_custom_call.1} parent=0
    #allocation2 [shape = 'u8[40960]{0}', space=vmem, size = 0xa000, scoped, tag = 'input window, operand 0, single buffered']
    #allocation3 [shape = 's32[1]{0}', space=sflag, size = 0x4, scoped, tag = 'scoped memory for tpu_custom_call.1']
    #allocation4 [shape = 's32[1]{0}', space=sflag, size = 0x4, scoped, tag = 'scoped memory for tpu_custom_call.1']
    #allocation5 [shape = 'u8[2621440]{0}', space=vmem, size = 0x280000, scoped, tag = 'input window, operand 1, single buffered']
    #allocation6 [shape = 's32[1]{0}', space=sflag, size = 0x4, scoped, tag = 'scoped memory for tpu_custom_call.1']
    #allocation7 [shape = 'u8[2048]{0}', space=vmem, size = 0x800, scoped, tag = 'input window, operand 2, single buffered']
    #allocation8 [shape = 'u8[1048576]{0}', space=vmem, size = 0x100000, scoped, tag = 'input window, operand 3, single buffered']
    #allocation9 [shape = 's32[1]{0}', space=sflag, size = 0x4, scoped, tag = 'scoped memory for tpu_custom_call.1']
    #allocation10 [shape = 'u8[2048]{0}', space=vmem, size = 0x800, scoped, tag = 'input window, operand 4, single buffered']
    #allocation11 [shape = 'u8[262144]{0}', space=vmem, size = 0x40000, scoped, tag = 'input window, operand 5, single buffered']
    #allocation12 [shape = 's32[1]{0}', space=sflag, size = 0x4, scoped, tag = 'scoped memory for tpu_custom_call.1']
    #allocation13 [shape = 'u8[512]{0}', space=vmem, size = 0x400, scoped, tag = 'input window, operand 6, single buffered']
    #allocation14 [shape = 'u8[4096]{0}', space=vmem, size = 0x1000, scoped, tag = 'output window, operand 0, single buffered']
    %12 = vsyncpa [#allocation3], 0
    %13 = vsyncpa [#allocation6], 0
    %14 = vsyncpa [#allocation9], 0
    %15 = vsyncpa [#allocation12], 0
    %16 = vsyncpa [#allocation4], 0
    // Predicated region
    $region2: #{tpu_custom_call.1} parent=1 // pred_check
      _
    $region3: #{tpu_custom_call.1} parent=1 // pred_check_branch
      %18 = sbr.rel (0) target = $region5
    $region4: #{tpu_custom_call.1} parent=1 // pred_region
      %s20 = ssub.s32 1280, 1280
      %21 = vsyncadd [#allocation3], %s20
      %s23 = sshll.u32 [#allocation2], 4
      %s24 = int_to_ptr.vmem [resolvable:$true] %s23
      %26 = dma.hbm_to_vmem [thread:$0]  %s0, 1280, %s24, [#allocation3]
    $region5: #{tpu_custom_call.1} parent=1 // pred_fallthru
      _
    // Predicated region
    $region6: #{tpu_custom_call.1} parent=1 // pred_check
      _
    $region7: #{tpu_custom_call.1} parent=1 // pred_check_branch
      %28 = sbr.rel (0) target = $region9
    $region8: #{tpu_custom_call.1} parent=1 // pred_region
      %s30 = ssub.s32 81920, 81920
      %31 = vsyncadd [#allocation6], %s30
      %s32 = sshll.u32 [#allocation5], 4
      %s33 = int_to_ptr.vmem [resolvable:$true] %s32
      %38 = dma.hbm_to_vmem [thread:$0]  %s1, 81920, %s33, [#allocation6], 512, 512, 32
    $region9: #{tpu_custom_call.1} parent=1 // pred_fallthru
      _
    // Predicated region
    $region10: #{tpu_custom_call.1} parent=1 // pred_check
      _
    $region11: #{tpu_custom_call.1} parent=1 // pred_check_branch
      %40 = sbr.rel (0) target = $region13
    $region12: #{tpu_custom_call.1} parent=1 // pred_region
      %s42 = ssub.s32 64, 64
      %43 = vsyncadd [#allocation6], %s42
      %s45 = sshll.u32 [#allocation7], 4
      %s46 = int_to_ptr.vmem [resolvable:$true] %s45
      %48 = dma.hbm_to_vmem [thread:$0]  %s2, 64, %s46, [#allocation6]
    $region13: #{tpu_custom_call.1} parent=1 // pred_fallthru
      _
    // Predicated region
    $region14: #{tpu_custom_call.1} parent=1 // pred_check
      _
    $region15: #{tpu_custom_call.1} parent=1 // pred_check_branch
      %50 = sbr.rel (0) target = $region17
    $region16: #{tpu_custom_call.1} parent=1 // pred_region
      %s52 = ssub.s32 32768, 32768
      %53 = vsyncadd [#allocation9], %s52
      %s54 = sshll.u32 [#allocation8], 4
      %s55 = int_to_ptr.vmem [resolvable:$true] %s54
      %60 = dma.hbm_to_vmem [thread:$0]  %s3, 32768, %s55, [#allocation9], 512, 512, 32
    $region17: #{tpu_custom_call.1} parent=1 // pred_fallthru
      _
    // Predicated region
    $region18: #{tpu_custom_call.1} parent=1 // pred_check
      _
    $region19: #{tpu_custom_call.1} parent=1 // pred_check_branch
      %62 = sbr.rel (0) target = $region21
    $region20: #{tpu_custom_call.1} parent=1 // pred_region
      %s64 = ssub.s32 64, 64
      %65 = vsyncadd [#allocation9], %s64
      %s67 = sshll.u32 [#allocation10], 4
      %s68 = int_to_ptr.vmem [resolvable:$true] %s67
      %70 = dma.hbm_to_vmem [thread:$0]  %s4, 64, %s68, [#allocation9]
    $region21: #{tpu_custom_call.1} parent=1 // pred_fallthru
      _
    // Predicated region
    $region22: #{tpu_custom_call.1} parent=1 // pred_check
      _
    $region23: #{tpu_custom_call.1} parent=1 // pred_check_branch
      %72 = sbr.rel (0) target = $region25
    $region24: #{tpu_custom_call.1} parent=1 // pred_region
      %s74 = ssub.s32 8192, 8192
      %75 = vsyncadd [#allocation12], %s74
      %s76 = sshll.u32 [#allocation11], 4
      %s77 = int_to_ptr.vmem [resolvable:$true] %s76
      %82 = dma.hbm_to_vmem [thread:$0]  %s5, 8192, %s77, [#allocation12], 128, 128, 8
    $region25: #{tpu_custom_call.1} parent=1 // pred_fallthru
      _
    // Predicated region
    $region26: #{tpu_custom_call.1} parent=1 // pred_check
      _
    $region27: #{tpu_custom_call.1} parent=1 // pred_check_branch
      %84 = sbr.rel (0) target = $region29
    $region28: #{tpu_custom_call.1} parent=1 // pred_region
      %s86 = ssub.s32 16, 16
      %87 = vsyncadd [#allocation12], %s86
      %s89 = sshll.u32 [#allocation13], 4
      %s90 = int_to_ptr.vmem [resolvable:$true] %s89
      %92 = dma.hbm_to_vmem [thread:$0]  %s6, 16, %s90, [#allocation12]
    $region29: #{tpu_custom_call.1} parent=1 // pred_fallthru
      _
    // Predicated region
    $region30: #{tpu_custom_call.1} parent=1 // pred_check
      _
    $region31: #{tpu_custom_call.1} parent=1 // pred_check_branch
      %94 = sbr.rel (0) target = $region33
    $region32: #{tpu_custom_call.1} parent=1 // pred_region
      %95 = dma.done [#allocation3], 1280
    $region33: #{tpu_custom_call.1} parent=1 // pred_fallthru
      _
    // Predicated region
    $region34: #{tpu_custom_call.1} parent=1 // pred_check
      _
    $region35: #{tpu_custom_call.1} parent=1 // pred_check_branch
      %97 = sbr.rel (0) target = $region37
    $region36: #{tpu_custom_call.1} parent=1 // pred_region
      %98 = dma.done [#allocation6], 81920
    $region37: #{tpu_custom_call.1} parent=1 // pred_fallthru
      _
    // Predicated region
    $region38: #{tpu_custom_call.1} parent=1 // pred_check
      _
    $region39: #{tpu_custom_call.1} parent=1 // pred_check_branch
      %100 = sbr.rel (0) target = $region41
    $region40: #{tpu_custom_call.1} parent=1 // pred_region
      %101 = dma.done [#allocation6], 64
    $region41: #{tpu_custom_call.1} parent=1 // pred_fallthru
      _
    // Predicated region
    $region42: #{tpu_custom_call.1} parent=1 // pred_check
      _
    $region43: #{tpu_custom_call.1} parent=1 // pred_check_branch
      %103 = sbr.rel (0) target = $region45
    $region44: #{tpu_custom_call.1} parent=1 // pred_region
      %104 = dma.done [#allocation9], 32768
    $region45: #{tpu_custom_call.1} parent=1 // pred_fallthru
      _
    // Predicated region
    $region46: #{tpu_custom_call.1} parent=1 // pred_check
      _
    $region47: #{tpu_custom_call.1} parent=1 // pred_check_branch
      %106 = sbr.rel (0) target = $region49
    $region48: #{tpu_custom_call.1} parent=1 // pred_region
      %107 = dma.done [#allocation9], 64
    $region49: #{tpu_custom_call.1} parent=1 // pred_fallthru
      _
    // Predicated region
    $region50: #{tpu_custom_call.1} parent=1 // pred_check
      _
    $region51: #{tpu_custom_call.1} parent=1 // pred_check_branch
      %109 = sbr.rel (0) target = $region53
    $region52: #{tpu_custom_call.1} parent=1 // pred_region
      %110 = dma.done [#allocation12], 8192
    $region53: #{tpu_custom_call.1} parent=1 // pred_fallthru
      _
    // Predicated region
    $region54: #{tpu_custom_call.1} parent=1 // pred_check
      _
    $region55: #{tpu_custom_call.1} parent=1 // pred_check_branch
      %112 = sbr.rel (0) target = $region57
    $region56: #{tpu_custom_call.1} parent=1 // pred_region
      %113 = dma.done [#allocation12], 16
    $region57: #{tpu_custom_call.1} parent=1 // pred_fallthru
      _
    %v114 = vld [vmem:[#allocation2] sm:$0xff]
    %v115 = vld [vmem:[#allocation2 + $0x8] sm:$0xff]
    %v116 = vld [vmem:[#allocation2 + $0x10] sm:$0xff]
    %v117 = vld [vmem:[#allocation2 + $0x18] sm:$0xff]
    %v118 = vld [vmem:[#allocation2 + $0x20] sm:$0xff]
    %v119 = vld [vmem:[#allocation2 + $0x28] sm:$0xff]
    %v120 = vld [vmem:[#allocation2 + $0x30] sm:$0xff]
    %v121 = vld [vmem:[#allocation2 + $0x38] sm:$0xff]
    %v122 = vld [vmem:[#allocation2 + $0x40] sm:$0xff]
    %v123 = vld [vmem:[#allocation2 + $0x48] sm:$0xff]
    %v124 = vld [vmem:[#allocation5] sm:$0xff]
    %v125 = vld [vmem:[#allocation5 + $0x8] sm:$0xff]
    %v126 = vld [vmem:[#allocation5 + $0x10] sm:$0xff]
    %v127 = vld [vmem:[#allocation5 + $0x18] sm:$0xff]
    %v128 = vld [vmem:[#allocation5 + $0x20] sm:$0xff]
    %v129 = vld [vmem:[#allocation5 + $0x28] sm:$0xff]
    %v130 = vld [vmem:[#allocation5 + $0x30] sm:$0xff]
    %v131 = vld [vmem:[#allocation5 + $0x38] sm:$0xff]
    %v132 = vld [vmem:[#allocation5 + $0x40] sm:$0xff]
    %v133 = vld [vmem:[#allocation5 + $0x48] sm:$0xff]
    %v134 = vld [vmem:[#allocation5 + $0x50] sm:$0xff]
    %v135 = vld [vmem:[#allocation5 + $0x58] sm:$0xff]
    %v136 = vld [vmem:[#allocation5 + $0x60] sm:$0xff]
    %v137 = vld [vmem:[#allocation5 + $0x68] sm:$0xff]
    %v138 = vld [vmem:[#allocation5 + $0x70] sm:$0xff]
    %v139 = vld [vmem:[#allocation5 + $0x78] sm:$0xff]
    %v140 = vld [vmem:[#allocation5 + $0x80] sm:$0xff]
    %v141 = vld [vmem:[#allocation5 + $0x88] sm:$0xff]
    %v142 = vld [vmem:[#allocation5 + $0x90] sm:$0xff]
    %v143 = vld [vmem:[#allocation5 + $0x98] sm:$0xff]
    %v144 = vld [vmem:[#allocation5 + $0xa0] sm:$0xff]
    %v145 = vld [vmem:[#allocation5 + $0xa8] sm:$0xff]
    %v146 = vld [vmem:[#allocation5 + $0xb0] sm:$0xff]
    %v147 = vld [vmem:[#allocation5 + $0xb8] sm:$0xff]
    %v148 = vld [vmem:[#allocation5 + $0xc0] sm:$0xff]
    %v149 = vld [vmem:[#allocation5 + $0xc8] sm:$0xff]
    %v150 = vld [vmem:[#allocation5 + $0xd0] sm:$0xff]
    %v151 = vld [vmem:[#allocation5 + $0xd8] sm:$0xff]
    %v152 = vld [vmem:[#allocation5 + $0xe0] sm:$0xff]
    %v153 = vld [vmem:[#allocation5 + $0xe8] sm:$0xff]
    %v154 = vld [vmem:[#allocation5 + $0xf0] sm:$0xff]
    %v155 = vld [vmem:[#allocation5 + $0xf8] sm:$0xff]
    %v156 = vld [vmem:[#allocation5 + $0x100] sm:$0xff]
    %v157 = vld [vmem:[#allocation5 + $0x108] sm:$0xff]
    %v158 = vld [vmem:[#allocation5 + $0x110] sm:$0xff]
    %v159 = vld [vmem:[#allocation5 + $0x118] sm:$0xff]
    %v160 = vld [vmem:[#allocation5 + $0x120] sm:$0xff]
    %v161 = vld [vmem:[#allocation5 + $0x128] sm:$0xff]
    %v162 = vld [vmem:[#allocation5 + $0x130] sm:$0xff]
    %v163 = vld [vmem:[#allocation5 + $0x138] sm:$0xff]
    %v164 = vld [vmem:[#allocation5 + $0x140] sm:$0xff]
    %v165 = vld [vmem:[#allocation5 + $0x148] sm:$0xff]
    %v166 = vld [vmem:[#allocation5 + $0x150] sm:$0xff]
    %v167 = vld [vmem:[#allocation5 + $0x158] sm:$0xff]
    %v168 = vld [vmem:[#allocation5 + $0x160] sm:$0xff]
    %v169 = vld [vmem:[#allocation5 + $0x168] sm:$0xff]
    %v170 = vld [vmem:[#allocation5 + $0x170] sm:$0xff]
    %v171 = vld [vmem:[#allocation5 + $0x178] sm:$0xff]
    %v172 = vld [vmem:[#allocation5 + $0x180] sm:$0xff]
    %v173 = vld [vmem:[#allocation5 + $0x188] sm:$0xff]
    %v174 = vld [vmem:[#allocation5 + $0x190] sm:$0xff]
    %v175 = vld [vmem:[#allocation5 + $0x198] sm:$0xff]
    %v176 = vld [vmem:[#allocation5 + $0x1a0] sm:$0xff]
    %v177 = vld [vmem:[#allocation5 + $0x1a8] sm:$0xff]
    %v178 = vld [vmem:[#allocation5 + $0x1b0] sm:$0xff]
    %v179 = vld [vmem:[#allocation5 + $0x1b8] sm:$0xff]
    %v180 = vld [vmem:[#allocation5 + $0x1c0] sm:$0xff]
    %v181 = vld [vmem:[#allocation5 + $0x1c8] sm:$0xff]
    %v182 = vld [vmem:[#allocation5 + $0x1d0] sm:$0xff]
    %v183 = vld [vmem:[#allocation5 + $0x1d8] sm:$0xff]
    %v184 = vld [vmem:[#allocation5 + $0x1e0] sm:$0xff]
    %v185 = vld [vmem:[#allocation5 + $0x1e8] sm:$0xff]
    %v186 = vld [vmem:[#allocation5 + $0x1f0] sm:$0xff]
    %v187 = vld [vmem:[#allocation5 + $0x1f8] sm:$0xff]
    %v188 = vld [vmem:[#allocation5 + $0x200] sm:$0xff]
    %v189 = vld [vmem:[#allocation5 + $0x208] sm:$0xff]
    %v190 = vld [vmem:[#allocation5 + $0x210] sm:$0xff]
    %v191 = vld [vmem:[#allocation5 + $0x218] sm:$0xff]
    %v192 = vld [vmem:[#allocation5 + $0x220] sm:$0xff]
    %v193 = vld [vmem:[#allocation5 + $0x228] sm:$0xff]
    %v194 = vld [vmem:[#allocation5 + $0x230] sm:$0xff]
    %v195 = vld [vmem:[#allocation5 + $0x238] sm:$0xff]
    %v196 = vld [vmem:[#allocation5 + $0x240] sm:$0xff]
    %v197 = vld [vmem:[#allocation5 + $0x248] sm:$0xff]
    %v198 = vld [vmem:[#allocation5 + $0x250] sm:$0xff]
    %v199 = vld [vmem:[#allocation5 + $0x258] sm:$0xff]
    %v200 = vld [vmem:[#allocation5 + $0x260] sm:$0xff]
    %v201 = vld [vmem:[#allocation5 + $0x268] sm:$0xff]
    %v202 = vld [vmem:[#allocation5 + $0x270] sm:$0xff]
    %v203 = vld [vmem:[#allocation5 + $0x278] sm:$0xff]
    %v204 = vld [vmem:[#allocation5 + $0x280] sm:$0xff]
    %v205 = vld [vmem:[#allocation5 + $0x288] sm:$0xff]
    %v206 = vld [vmem:[#allocation5 + $0x290] sm:$0xff]
    %v207 = vld [vmem:[#allocation5 + $0x298] sm:$0xff]
    %v208 = vld [vmem:[#allocation5 + $0x2a0] sm:$0xff]
    %v209 = vld [vmem:[#allocation5 + $0x2a8] sm:$0xff]
    %v210 = vld [vmem:[#allocation5 + $0x2b0] sm:$0xff]
    %v211 = vld [vmem:[#allocation5 + $0x2b8] sm:$0xff]
    %v212 = vld [vmem:[#allocation5 + $0x2c0] sm:$0xff]
    %v213 = vld [vmem:[#allocation5 + $0x2c8] sm:$0xff]
    %v214 = vld [vmem:[#allocation5 + $0x2d0] sm:$0xff]
    %v215 = vld [vmem:[#allocation5 + $0x2d8] sm:$0xff]
    %v216 = vld [vmem:[#allocation5 + $0x2e0] sm:$0xff]
    %v217 = vld [vmem:[#allocation5 + $0x2e8] sm:$0xff]
    %v218 = vld [vmem:[#allocation5 + $0x2f0] sm:$0xff]
    %v219 = vld [vmem:[#allocation5 + $0x2f8] sm:$0xff]
    %v220 = vld [vmem:[#allocation5 + $0x300] sm:$0xff]
    %v221 = vld [vmem:[#allocation5 + $0x308] sm:$0xff]
    %v222 = vld [vmem:[#allocation5 + $0x310] sm:$0xff]
    %v223 = vld [vmem:[#allocation5 + $0x318] sm:$0xff]
    %v224 = vld [vmem:[#allocation5 + $0x320] sm:$0xff]
    %v225 = vld [vmem:[#allocation5 + $0x328] sm:$0xff]
    %v226 = vld [vmem:[#allocation5 + $0x330] sm:$0xff]
    %v227 = vld [vmem:[#allocation5 + $0x338] sm:$0xff]
    %v228 = vld [vmem:[#allocation5 + $0x340] sm:$0xff]
    %v229 = vld [vmem:[#allocation5 + $0x348] sm:$0xff]
    %v230 = vld [vmem:[#allocation5 + $0x350] sm:$0xff]
    %v231 = vld [vmem:[#allocation5 + $0x358] sm:$0xff]
    %v232 = vld [vmem:[#allocation5 + $0x360] sm:$0xff]
    %v233 = vld [vmem:[#allocation5 + $0x368] sm:$0xff]
    %v234 = vld [vmem:[#allocation5 + $0x370] sm:$0xff]
    %v235 = vld [vmem:[#allocation5 + $0x378] sm:$0xff]
    %v236 = vld [vmem:[#allocation5 + $0x380] sm:$0xff]
    %v237 = vld [vmem:[#allocation5 + $0x388] sm:$0xff]
    %v238 = vld [vmem:[#allocation5 + $0x390] sm:$0xff]
    %v239 = vld [vmem:[#allocation5 + $0x398] sm:$0xff]
    %v240 = vld [vmem:[#allocation5 + $0x3a0] sm:$0xff]
    %v241 = vld [vmem:[#allocation5 + $0x3a8] sm:$0xff]
    %v242 = vld [vmem:[#allocation5 + $0x3b0] sm:$0xff]
    %v243 = vld [vmem:[#allocation5 + $0x3b8] sm:$0xff]
    %v244 = vld [vmem:[#allocation5 + $0x3c0] sm:$0xff]
    %v245 = vld [vmem:[#allocation5 + $0x3c8] sm:$0xff]
    %v246 = vld [vmem:[#allocation5 + $0x3d0] sm:$0xff]
    %v247 = vld [vmem:[#allocation5 + $0x3d8] sm:$0xff]
    %v248 = vld [vmem:[#allocation5 + $0x3e0] sm:$0xff]
    %v249 = vld [vmem:[#allocation5 + $0x3e8] sm:$0xff]
    %v250 = vld [vmem:[#allocation5 + $0x3f0] sm:$0xff]
    %v251 = vld [vmem:[#allocation5 + $0x3f8] sm:$0xff]
    %v252 = vld [vmem:[#allocation5 + $0x400] sm:$0xff]
    %v253 = vld [vmem:[#allocation5 + $0x408] sm:$0xff]
    %v254 = vld [vmem:[#allocation5 + $0x410] sm:$0xff]
    %v255 = vld [vmem:[#allocation5 + $0x418] sm:$0xff]
    %v256 = vld [vmem:[#allocation5 + $0x420] sm:$0xff]
    %v257 = vld [vmem:[#allocation5 + $0x428] sm:$0xff]
    %v258 = vld [vmem:[#allocation5 + $0x430] sm:$0xff]
    %v259 = vld [vmem:[#allocation5 + $0x438] sm:$0xff]
    %v260 = vld [vmem:[#allocation5 + $0x440] sm:$0xff]
    %v261 = vld [vmem:[#allocation5 + $0x448] sm:$0xff]
    %v262 = vld [vmem:[#allocation5 + $0x450] sm:$0xff]
    %v263 = vld [vmem:[#allocation5 + $0x458] sm:$0xff]
    %v264 = vld [vmem:[#allocation5 + $0x460] sm:$0xff]
    %v265 = vld [vmem:[#allocation5 + $0x468] sm:$0xff]
    %v266 = vld [vmem:[#allocation5 + $0x470] sm:$0xff]
    %v267 = vld [vmem:[#allocation5 + $0x478] sm:$0xff]
    %v268 = vld [vmem:[#allocation5 + $0x480] sm:$0xff]
    %v269 = vld [vmem:[#allocation5 + $0x488] sm:$0xff]
    %v270 = vld [vmem:[#allocation5 + $0x490] sm:$0xff]
    %v271 = vld [vmem:[#allocation5 + $0x498] sm:$0xff]
    %v272 = vld [vmem:[#allocation5 + $0x4a0] sm:$0xff]
    %v273 = vld [vmem:[#allocation5 + $0x4a8] sm:$0xff]
    %v274 = vld [vmem:[#allocation5 + $0x4b0] sm:$0xff]
    %v275 = vld [vmem:[#allocation5 + $0x4b8] sm:$0xff]
    %v276 = vld [vmem:[#allocation5 + $0x4c0] sm:$0xff]
    %v277 = vld [vmem:[#allocation5 + $0x4c8] sm:$0xff]
    %v278 = vld [vmem:[#allocation5 + $0x4d0] sm:$0xff]
    %v279 = vld [vmem:[#allocation5 + $0x4d8] sm:$0xff]
    %v280 = vld [vmem:[#allocation5 + $0x4e0] sm:$0xff]
    %v281 = vld [vmem:[#allocation5 + $0x4e8] sm:$0xff]
    %v282 = vld [vmem:[#allocation5 + $0x4f0] sm:$0xff]
    %v283 = vld [vmem:[#allocation5 + $0x4f8] sm:$0xff]
    %v284 = vld [vmem:[#allocation5 + $0x500] sm:$0xff]
    %v285 = vld [vmem:[#allocation5 + $0x508] sm:$0xff]
    %v286 = vld [vmem:[#allocation5 + $0x510] sm:$0xff]
    %v287 = vld [vmem:[#allocation5 + $0x518] sm:$0xff]
    %v288 = vld [vmem:[#allocation5 + $0x520] sm:$0xff]
    %v289 = vld [vmem:[#allocation5 + $0x528] sm:$0xff]
    %v290 = vld [vmem:[#allocation5 + $0x530] sm:$0xff]
    %v291 = vld [vmem:[#allocation5 + $0x538] sm:$0xff]
    %v292 = vld [vmem:[#allocation5 + $0x540] sm:$0xff]
    %v293 = vld [vmem:[#allocation5 + $0x548] sm:$0xff]
    %v294 = vld [vmem:[#allocation5 + $0x550] sm:$0xff]
    %v295 = vld [vmem:[#allocation5 + $0x558] sm:$0xff]
    %v296 = vld [vmem:[#allocation5 + $0x560] sm:$0xff]
    %v297 = vld [vmem:[#allocation5 + $0x568] sm:$0xff]
    %v298 = vld [vmem:[#allocation5 + $0x570] sm:$0xff]
    %v299 = vld [vmem:[#allocation5 + $0x578] sm:$0xff]
    %v300 = vld [vmem:[#allocation5 + $0x580] sm:$0xff]
    %v301 = vld [vmem:[#allocation5 + $0x588] sm:$0xff]
    %v302 = vld [vmem:[#allocation5 + $0x590] sm:$0xff]
    %v303 = vld [vmem:[#allocation5 + $0x598] sm:$0xff]
    %v304 = vld [vmem:[#allocation5 + $0x5a0] sm:$0xff]
    %v305 = vld [vmem:[#allocation5 + $0x5a8] sm:$0xff]
    %v306 = vld [vmem:[#allocation5 + $0x5b0] sm:$0xff]
    %v307 = vld [vmem:[#allocation5 + $0x5b8] sm:$0xff]
    %v308 = vld [vmem:[#allocation5 + $0x5c0] sm:$0xff]
    %v309 = vld [vmem:[#allocation5 + $0x5c8] sm:$0xff]
    %v310 = vld [vmem:[#allocation5 + $0x5d0] sm:$0xff]
    %v311 = vld [vmem:[#allocation5 + $0x5d8] sm:$0xff]
    %v312 = vld [vmem:[#allocation5 + $0x5e0] sm:$0xff]
    %v313 = vld [vmem:[#allocation5 + $0x5e8] sm:$0xff]
    %v314 = vld [vmem:[#allocation5 + $0x5f0] sm:$0xff]
    %v315 = vld [vmem:[#allocation5 + $0x5f8] sm:$0xff]
    %v316 = vld [vmem:[#allocation5 + $0x600] sm:$0xff]
    %v317 = vld [vmem:[#allocation5 + $0x608] sm:$0xff]
    %v318 = vld [vmem:[#allocation5 + $0x610] sm:$0xff]
    %v319 = vld [vmem:[#allocation5 + $0x618] sm:$0xff]
    %v320 = vld [vmem:[#allocation5 + $0x620] sm:$0xff]
    %v321 = vld [vmem:[#allocation5 + $0x628] sm:$0xff]
    %v322 = vld [vmem:[#allocation5 + $0x630] sm:$0xff]
    %v323 = vld [vmem:[#allocation5 + $0x638] sm:$0xff]
    %v324 = vld [vmem:[#allocation5 + $0x640] sm:$0xff]
    %v325 = vld [vmem:[#allocation5 + $0x648] sm:$0xff]
    %v326 = vld [vmem:[#allocation5 + $0x650] sm:$0xff]
    %v327 = vld [vmem:[#allocation5 + $0x658] sm:$0xff]
    %v328 = vld [vmem:[#allocation5 + $0x660] sm:$0xff]
    %v329 = vld [vmem:[#allocation5 + $0x668] sm:$0xff]
    %v330 = vld [vmem:[#allocation5 + $0x670] sm:$0xff]
    %v331 = vld [vmem:[#allocation5 + $0x678] sm:$0xff]
    %v332 = vld [vmem:[#allocation5 + $0x680] sm:$0xff]
    %v333 = vld [vmem:[#allocation5 + $0x688] sm:$0xff]
    %v334 = vld [vmem:[#allocation5 + $0x690] sm:$0xff]
    %v335 = vld [vmem:[#allocation5 + $0x698] sm:$0xff]
    %v336 = vld [vmem:[#allocation5 + $0x6a0] sm:$0xff]
    %v337 = vld [vmem:[#allocation5 + $0x6a8] sm:$0xff]
    %v338 = vld [vmem:[#allocation5 + $0x6b0] sm:$0xff]
    %v339 = vld [vmem:[#allocation5 + $0x6b8] sm:$0xff]
    %v340 = vld [vmem:[#allocation5 + $0x6c0] sm:$0xff]
    %v341 = vld [vmem:[#allocation5 + $0x6c8] sm:$0xff]
    %v342 = vld [vmem:[#allocation5 + $0x6d0] sm:$0xff]
    %v343 = vld [vmem:[#allocation5 + $0x6d8] sm:$0xff]
    %v344 = vld [vmem:[#allocation5 + $0x6e0] sm:$0xff]
    %v345 = vld [vmem:[#allocation5 + $0x6e8] sm:$0xff]
    %v346 = vld [vmem:[#allocation5 + $0x6f0] sm:$0xff]
    %v347 = vld [vmem:[#allocation5 + $0x6f8] sm:$0xff]
    %v348 = vld [vmem:[#allocation5 + $0x700] sm:$0xff]
    %v349 = vld [vmem:[#allocation5 + $0x708] sm:$0xff]
    %v350 = vld [vmem:[#allocation5 + $0x710] sm:$0xff]
    %v351 = vld [vmem:[#allocation5 + $0x718] sm:$0xff]
    %v352 = vld [vmem:[#allocation5 + $0x720] sm:$0xff]
    %v353 = vld [vmem:[#allocation5 + $0x728] sm:$0xff]
    %v354 = vld [vmem:[#allocation5 + $0x730] sm:$0xff]
    %v355 = vld [vmem:[#allocation5 + $0x738] sm:$0xff]
    %v356 = vld [vmem:[#allocation5 + $0x740] sm:$0xff]
    %v357 = vld [vmem:[#allocation5 + $0x748] sm:$0xff]
    %v358 = vld [vmem:[#allocation5 + $0x750] sm:$0xff]
    %v359 = vld [vmem:[#allocation5 + $0x758] sm:$0xff]
    %v360 = vld [vmem:[#allocation5 + $0x760] sm:$0xff]
    %v361 = vld [vmem:[#allocation5 + $0x768] sm:$0xff]
    %v362 = vld [vmem:[#allocation5 + $0x770] sm:$0xff]
    %v363 = vld [vmem:[#allocation5 + $0x778] sm:$0xff]
    %v364 = vld [vmem:[#allocation5 + $0x780] sm:$0xff]
    %v365 = vld [vmem:[#allocation5 + $0x788] sm:$0xff]
    %v366 = vld [vmem:[#allocation5 + $0x790] sm:$0xff]
    %v367 = vld [vmem:[#allocation5 + $0x798] sm:$0xff]
    %v368 = vld [vmem:[#allocation5 + $0x7a0] sm:$0xff]
    %v369 = vld [vmem:[#allocation5 + $0x7a8] sm:$0xff]
    %v370 = vld [vmem:[#allocation5 + $0x7b0] sm:$0xff]
    %v371 = vld [vmem:[#allocation5 + $0x7b8] sm:$0xff]
    %v372 = vld [vmem:[#allocation5 + $0x7c0] sm:$0xff]
    %v373 = vld [vmem:[#allocation5 + $0x7c8] sm:$0xff]
    %v374 = vld [vmem:[#allocation5 + $0x7d0] sm:$0xff]
    %v375 = vld [vmem:[#allocation5 + $0x7d8] sm:$0xff]
    %v376 = vld [vmem:[#allocation5 + $0x7e0] sm:$0xff]
    %v377 = vld [vmem:[#allocation5 + $0x7e8] sm:$0xff]
    %v378 = vld [vmem:[#allocation5 + $0x7f0] sm:$0xff]
    %v379 = vld [vmem:[#allocation5 + $0x7f8] sm:$0xff]
    %v380 = vld [vmem:[#allocation5 + $0x800] sm:$0xff]
    %v381 = vld [vmem:[#allocation5 + $0x808] sm:$0xff]
    %v382 = vld [vmem:[#allocation5 + $0x810] sm:$0xff]
    %v383 = vld [vmem:[#allocation5 + $0x818] sm:$0xff]
    %v384 = vld [vmem:[#allocation5 + $0x820] sm:$0xff]
    %v385 = vld [vmem:[#allocation5 + $0x828] sm:$0xff]
    %v386 = vld [vmem:[#allocation5 + $0x830] sm:$0xff]
    %v387 = vld [vmem:[#allocation5 + $0x838] sm:$0xff]
    %v388 = vld [vmem:[#allocation5 + $0x840] sm:$0xff]
    %v389 = vld [vmem:[#allocation5 + $0x848] sm:$0xff]
    %v390 = vld [vmem:[#allocation5 + $0x850] sm:$0xff]
    %v391 = vld [vmem:[#allocation5 + $0x858] sm:$0xff]
    %v392 = vld [vmem:[#allocation5 + $0x860] sm:$0xff]
    %v393 = vld [vmem:[#allocation5 + $0x868] sm:$0xff]
    %v394 = vld [vmem:[#allocation5 + $0x870] sm:$0xff]
    %v395 = vld [vmem:[#allocation5 + $0x878] sm:$0xff]
    %v396 = vld [vmem:[#allocation5 + $0x880] sm:$0xff]
    %v397 = vld [vmem:[#allocation5 + $0x888] sm:$0xff]
    %v398 = vld [vmem:[#allocation5 + $0x890] sm:$0xff]
    %v399 = vld [vmem:[#allocation5 + $0x898] sm:$0xff]
    %v400 = vld [vmem:[#allocation5 + $0x8a0] sm:$0xff]
    %v401 = vld [vmem:[#allocation5 + $0x8a8] sm:$0xff]
    %v402 = vld [vmem:[#allocation5 + $0x8b0] sm:$0xff]
    %v403 = vld [vmem:[#allocation5 + $0x8b8] sm:$0xff]
    %v404 = vld [vmem:[#allocation5 + $0x8c0] sm:$0xff]
    %v405 = vld [vmem:[#allocation5 + $0x8c8] sm:$0xff]
    %v406 = vld [vmem:[#allocation5 + $0x8d0] sm:$0xff]
    %v407 = vld [vmem:[#allocation5 + $0x8d8] sm:$0xff]
    %v408 = vld [vmem:[#allocation5 + $0x8e0] sm:$0xff]
    %v409 = vld [vmem:[#allocation5 + $0x8e8] sm:$0xff]
    %v410 = vld [vmem:[#allocation5 + $0x8f0] sm:$0xff]
    %v411 = vld [vmem:[#allocation5 + $0x8f8] sm:$0xff]
    %v412 = vld [vmem:[#allocation5 + $0x900] sm:$0xff]
    %v413 = vld [vmem:[#allocation5 + $0x908] sm:$0xff]
    %v414 = vld [vmem:[#allocation5 + $0x910] sm:$0xff]
    %v415 = vld [vmem:[#allocation5 + $0x918] sm:$0xff]
    %v416 = vld [vmem:[#allocation5 + $0x920] sm:$0xff]
    %v417 = vld [vmem:[#allocation5 + $0x928] sm:$0xff]
    %v418 = vld [vmem:[#allocation5 + $0x930] sm:$0xff]
    %v419 = vld [vmem:[#allocation5 + $0x938] sm:$0xff]
    %v420 = vld [vmem:[#allocation5 + $0x940] sm:$0xff]
    %v421 = vld [vmem:[#allocation5 + $0x948] sm:$0xff]
    %v422 = vld [vmem:[#allocation5 + $0x950] sm:$0xff]
    %v423 = vld [vmem:[#allocation5 + $0x958] sm:$0xff]
    %v424 = vld [vmem:[#allocation5 + $0x960] sm:$0xff]
    %v425 = vld [vmem:[#allocation5 + $0x968] sm:$0xff]
    %v426 = vld [vmem:[#allocation5 + $0x970] sm:$0xff]
    %v427 = vld [vmem:[#allocation5 + $0x978] sm:$0xff]
    %v428 = vld [vmem:[#allocation5 + $0x980] sm:$0xff]
    %v429 = vld [vmem:[#allocation5 + $0x988] sm:$0xff]
    %v430 = vld [vmem:[#allocation5 + $0x990] sm:$0xff]
    %v431 = vld [vmem:[#allocation5 + $0x998] sm:$0xff]
    %v432 = vld [vmem:[#allocation5 + $0x9a0] sm:$0xff]
    %v433 = vld [vmem:[#allocation5 + $0x9a8] sm:$0xff]
    %v434 = vld [vmem:[#allocation5 + $0x9b0] sm:$0xff]
    %v435 = vld [vmem:[#allocation5 + $0x9b8] sm:$0xff]
    %v436 = vld [vmem:[#allocation5 + $0x9c0] sm:$0xff]
    %v437 = vld [vmem:[#allocation5 + $0x9c8] sm:$0xff]
    %v438 = vld [vmem:[#allocation5 + $0x9d0] sm:$0xff]
    %v439 = vld [vmem:[#allocation5 + $0x9d8] sm:$0xff]
    %v440 = vld [vmem:[#allocation5 + $0x9e0] sm:$0xff]
    %v441 = vld [vmem:[#allocation5 + $0x9e8] sm:$0xff]
    %v442 = vld [vmem:[#allocation5 + $0x9f0] sm:$0xff]
    %v443 = vld [vmem:[#allocation5 + $0x9f8] sm:$0xff]
    %v444 = vld [vmem:[#allocation5 + $0xa00] sm:$0xff]
    %v445 = vld [vmem:[#allocation5 + $0xa08] sm:$0xff]
    %v446 = vld [vmem:[#allocation5 + $0xa10] sm:$0xff]
    %v447 = vld [vmem:[#allocation5 + $0xa18] sm:$0xff]
    %v448 = vld [vmem:[#allocation5 + $0xa20] sm:$0xff]
    %v449 = vld [vmem:[#allocation5 + $0xa28] sm:$0xff]
    %v450 = vld [vmem:[#allocation5 + $0xa30] sm:$0xff]
    %v451 = vld [vmem:[#allocation5 + $0xa38] sm:$0xff]
    %v452 = vld [vmem:[#allocation5 + $0xa40] sm:$0xff]
    %v453 = vld [vmem:[#allocation5 + $0xa48] sm:$0xff]
    %v454 = vld [vmem:[#allocation5 + $0xa50] sm:$0xff]
    %v455 = vld [vmem:[#allocation5 + $0xa58] sm:$0xff]
    %v456 = vld [vmem:[#allocation5 + $0xa60] sm:$0xff]
    %v457 = vld [vmem:[#allocation5 + $0xa68] sm:$0xff]
    %v458 = vld [vmem:[#allocation5 + $0xa70] sm:$0xff]
    %v459 = vld [vmem:[#allocation5 + $0xa78] sm:$0xff]
    %v460 = vld [vmem:[#allocation5 + $0xa80] sm:$0xff]
    %v461 = vld [vmem:[#allocation5 + $0xa88] sm:$0xff]
    %v462 = vld [vmem:[#allocation5 + $0xa90] sm:$0xff]
    %v463 = vld [vmem:[#allocation5 + $0xa98] sm:$0xff]
    %v464 = vld [vmem:[#allocation5 + $0xaa0] sm:$0xff]
    %v465 = vld [vmem:[#allocation5 + $0xaa8] sm:$0xff]
    %v466 = vld [vmem:[#allocation5 + $0xab0] sm:$0xff]
    %v467 = vld [vmem:[#allocation5 + $0xab8] sm:$0xff]
    %v468 = vld [vmem:[#allocation5 + $0xac0] sm:$0xff]
    %v469 = vld [vmem:[#allocation5 + $0xac8] sm:$0xff]
    %v470 = vld [vmem:[#allocation5 + $0xad0] sm:$0xff]
    %v471 = vld [vmem:[#allocation5 + $0xad8] sm:$0xff]
    %v472 = vld [vmem:[#allocation5 + $0xae0] sm:$0xff]
    %v473 = vld [vmem:[#allocation5 + $0xae8] sm:$0xff]
    %v474 = vld [vmem:[#allocation5 + $0xaf0] sm:$0xff]
    %v475 = vld [vmem:[#allocation5 + $0xaf8] sm:$0xff]
    %v476 = vld [vmem:[#allocation5 + $0xb00] sm:$0xff]
    %v477 = vld [vmem:[#allocation5 + $0xb08] sm:$0xff]
    %v478 = vld [vmem:[#allocation5 + $0xb10] sm:$0xff]
    %v479 = vld [vmem:[#allocation5 + $0xb18] sm:$0xff]
    %v480 = vld [vmem:[#allocation5 + $0xb20] sm:$0xff]
    %v481 = vld [vmem:[#allocation5 + $0xb28] sm:$0xff]
    %v482 = vld [vmem:[#allocation5 + $0xb30] sm:$0xff]
    %v483 = vld [vmem:[#allocation5 + $0xb38] sm:$0xff]
    %v484 = vld [vmem:[#allocation5 + $0xb40] sm:$0xff]
    %v485 = vld [vmem:[#allocation5 + $0xb48] sm:$0xff]
    %v486 = vld [vmem:[#allocation5 + $0xb50] sm:$0xff]
    %v487 = vld [vmem:[#allocation5 + $0xb58] sm:$0xff]
    %v488 = vld [vmem:[#allocation5 + $0xb60] sm:$0xff]
    %v489 = vld [vmem:[#allocation5 + $0xb68] sm:$0xff]
    %v490 = vld [vmem:[#allocation5 + $0xb70] sm:$0xff]
    %v491 = vld [vmem:[#allocation5 + $0xb78] sm:$0xff]
    %v492 = vld [vmem:[#allocation5 + $0xb80] sm:$0xff]
    %v493 = vld [vmem:[#allocation5 + $0xb88] sm:$0xff]
    %v494 = vld [vmem:[#allocation5 + $0xb90] sm:$0xff]
    %v495 = vld [vmem:[#allocation5 + $0xb98] sm:$0xff]
    %v496 = vld [vmem:[#allocation5 + $0xba0] sm:$0xff]
    %v497 = vld [vmem:[#allocation5 + $0xba8] sm:$0xff]
    %v498 = vld [vmem:[#allocation5 + $0xbb0] sm:$0xff]
    %v499 = vld [vmem:[#allocation5 + $0xbb8] sm:$0xff]
    %v500 = vld [vmem:[#allocation5 + $0xbc0] sm:$0xff]
    %v501 = vld [vmem:[#allocation5 + $0xbc8] sm:$0xff]
    %v502 = vld [vmem:[#allocation5 + $0xbd0] sm:$0xff]
    %v503 = vld [vmem:[#allocation5 + $0xbd8] sm:$0xff]
    %v504 = vld [vmem:[#allocation5 + $0xbe0] sm:$0xff]
    %v505 = vld [vmem:[#allocation5 + $0xbe8] sm:$0xff]
    %v506 = vld [vmem:[#allocation5 + $0xbf0] sm:$0xff]
    %v507 = vld [vmem:[#allocation5 + $0xbf8] sm:$0xff]
    %v508 = vld [vmem:[#allocation5 + $0xc00] sm:$0xff]
    %v509 = vld [vmem:[#allocation5 + $0xc08] sm:$0xff]
    %v510 = vld [vmem:[#allocation5 + $0xc10] sm:$0xff]
    %v511 = vld [vmem:[#allocation5 + $0xc18] sm:$0xff]
    %v512 = vld [vmem:[#allocation5 + $0xc20] sm:$0xff]
    %v513 = vld [vmem:[#allocation5 + $0xc28] sm:$0xff]
    %v514 = vld [vmem:[#allocation5 + $0xc30] sm:$0xff]
    %v515 = vld [vmem:[#allocation5 + $0xc38] sm:$0xff]
    %v516 = vld [vmem:[#allocation5 + $0xc40] sm:$0xff]
    %v517 = vld [vmem:[#allocation5 + $0xc48] sm:$0xff]
    %v518 = vld [vmem:[#allocation5 + $0xc50] sm:$0xff]
    %v519 = vld [vmem:[#allocation5 + $0xc58] sm:$0xff]
    %v520 = vld [vmem:[#allocation5 + $0xc60] sm:$0xff]
    %v521 = vld [vmem:[#allocation5 + $0xc68] sm:$0xff]
    %v522 = vld [vmem:[#allocation5 + $0xc70] sm:$0xff]
    %v523 = vld [vmem:[#allocation5 + $0xc78] sm:$0xff]
    %v524 = vld [vmem:[#allocation5 + $0xc80] sm:$0xff]
    %v525 = vld [vmem:[#allocation5 + $0xc88] sm:$0xff]
    %v526 = vld [vmem:[#allocation5 + $0xc90] sm:$0xff]
    %v527 = vld [vmem:[#allocation5 + $0xc98] sm:$0xff]
    %v528 = vld [vmem:[#allocation5 + $0xca0] sm:$0xff]
    %v529 = vld [vmem:[#allocation5 + $0xca8] sm:$0xff]
    %v530 = vld [vmem:[#allocation5 + $0xcb0] sm:$0xff]
    %v531 = vld [vmem:[#allocation5 + $0xcb8] sm:$0xff]
    %v532 = vld [vmem:[#allocation5 + $0xcc0] sm:$0xff]
    %v533 = vld [vmem:[#allocation5 + $0xcc8] sm:$0xff]
    %v534 = vld [vmem:[#allocation5 + $0xcd0] sm:$0xff]
    %v535 = vld [vmem:[#allocation5 + $0xcd8] sm:$0xff]
    %v536 = vld [vmem:[#allocation5 + $0xce0] sm:$0xff]
    %v537 = vld [vmem:[#allocation5 + $0xce8] sm:$0xff]
    %v538 = vld [vmem:[#allocation5 + $0xcf0] sm:$0xff]
    %v539 = vld [vmem:[#allocation5 + $0xcf8] sm:$0xff]
    %v540 = vld [vmem:[#allocation5 + $0xd00] sm:$0xff]
    %v541 = vld [vmem:[#allocation5 + $0xd08] sm:$0xff]
    %v542 = vld [vmem:[#allocation5 + $0xd10] sm:$0xff]
    %v543 = vld [vmem:[#allocation5 + $0xd18] sm:$0xff]
    %v544 = vld [vmem:[#allocation5 + $0xd20] sm:$0xff]
    %v545 = vld [vmem:[#allocation5 + $0xd28] sm:$0xff]
    %v546 = vld [vmem:[#allocation5 + $0xd30] sm:$0xff]
    %v547 = vld [vmem:[#allocation5 + $0xd38] sm:$0xff]
    %v548 = vld [vmem:[#allocation5 + $0xd40] sm:$0xff]
    %v549 = vld [vmem:[#allocation5 + $0xd48] sm:$0xff]
    %v550 = vld [vmem:[#allocation5 + $0xd50] sm:$0xff]
    %v551 = vld [vmem:[#allocation5 + $0xd58] sm:$0xff]
    %v552 = vld [vmem:[#allocation5 + $0xd60] sm:$0xff]
    %v553 = vld [vmem:[#allocation5 + $0xd68] sm:$0xff]
    %v554 = vld [vmem:[#allocation5 + $0xd70] sm:$0xff]
    %v555 = vld [vmem:[#allocation5 + $0xd78] sm:$0xff]
    %v556 = vld [vmem:[#allocation5 + $0xd80] sm:$0xff]
    %v557 = vld [vmem:[#allocation5 + $0xd88] sm:$0xff]
    %v558 = vld [vmem:[#allocation5 + $0xd90] sm:$0xff]
    %v559 = vld [vmem:[#allocation5 + $0xd98] sm:$0xff]
    %v560 = vld [vmem:[#allocation5 + $0xda0] sm:$0xff]
    %v561 = vld [vmem:[#allocation5 + $0xda8] sm:$0xff]
    %v562 = vld [vmem:[#allocation5 + $0xdb0] sm:$0xff]
    %v563 = vld [vmem:[#allocation5 + $0xdb8] sm:$0xff]
    %v564 = vld [vmem:[#allocation5 + $0xdc0] sm:$0xff]
    %v565 = vld [vmem:[#allocation5 + $0xdc8] sm:$0xff]
    %v566 = vld [vmem:[#allocation5 + $0xdd0] sm:$0xff]
    %v567 = vld [vmem:[#allocation5 + $0xdd8] sm:$0xff]
    %v568 = vld [vmem:[#allocation5 + $0xde0] sm:$0xff]
    %v569 = vld [vmem:[#allocation5 + $0xde8] sm:$0xff]
    %v570 = vld [vmem:[#allocation5 + $0xdf0] sm:$0xff]
    %v571 = vld [vmem:[#allocation5 + $0xdf8] sm:$0xff]
    %v572 = vld [vmem:[#allocation5 + $0xe00] sm:$0xff]
    %v573 = vld [vmem:[#allocation5 + $0xe08] sm:$0xff]
    %v574 = vld [vmem:[#allocation5 + $0xe10] sm:$0xff]
    %v575 = vld [vmem:[#allocation5 + $0xe18] sm:$0xff]
    %v576 = vld [vmem:[#allocation5 + $0xe20] sm:$0xff]
    %v577 = vld [vmem:[#allocation5 + $0xe28] sm:$0xff]
    %v578 = vld [vmem:[#allocation5 + $0xe30] sm:$0xff]
    %v579 = vld [vmem:[#allocation5 + $0xe38] sm:$0xff]
    %v580 = vld [vmem:[#allocation5 + $0xe40] sm:$0xff]
    %v581 = vld [vmem:[#allocation5 + $0xe48] sm:$0xff]
    %v582 = vld [vmem:[#allocation5 + $0xe50] sm:$0xff]
    %v583 = vld [vmem:[#allocation5 + $0xe58] sm:$0xff]
    %v584 = vld [vmem:[#allocation5 + $0xe60] sm:$0xff]
    %v585 = vld [vmem:[#allocation5 + $0xe68] sm:$0xff]
    %v586 = vld [vmem:[#allocation5 + $0xe70] sm:$0xff]
    %v587 = vld [vmem:[#allocation5 + $0xe78] sm:$0xff]
    %v588 = vld [vmem:[#allocation5 + $0xe80] sm:$0xff]
    %v589 = vld [vmem:[#allocation5 + $0xe88] sm:$0xff]
    %v590 = vld [vmem:[#allocation5 + $0xe90] sm:$0xff]
    %v591 = vld [vmem:[#allocation5 + $0xe98] sm:$0xff]
    %v592 = vld [vmem:[#allocation5 + $0xea0] sm:$0xff]
    %v593 = vld [vmem:[#allocation5 + $0xea8] sm:$0xff]
    %v594 = vld [vmem:[#allocation5 + $0xeb0] sm:$0xff]
    %v595 = vld [vmem:[#allocation5 + $0xeb8] sm:$0xff]
    %v596 = vld [vmem:[#allocation5 + $0xec0] sm:$0xff]
    %v597 = vld [vmem:[#allocation5 + $0xec8] sm:$0xff]
    %v598 = vld [vmem:[#allocation5 + $0xed0] sm:$0xff]
    %v599 = vld [vmem:[#allocation5 + $0xed8] sm:$0xff]
    %v600 = vld [vmem:[#allocation5 + $0xee0] sm:$0xff]
    %v601 = vld [vmem:[#allocation5 + $0xee8] sm:$0xff]
    %v602 = vld [vmem:[#allocation5 + $0xef0] sm:$0xff]
    %v603 = vld [vmem:[#allocation5 + $0xef8] sm:$0xff]
    %v604 = vld [vmem:[#allocation5 + $0xf00] sm:$0xff]
    %v605 = vld [vmem:[#allocation5 + $0xf08] sm:$0xff]
    %v606 = vld [vmem:[#allocation5 + $0xf10] sm:$0xff]
    %v607 = vld [vmem:[#allocation5 + $0xf18] sm:$0xff]
    %v608 = vld [vmem:[#allocation5 + $0xf20] sm:$0xff]
    %v609 = vld [vmem:[#allocation5 + $0xf28] sm:$0xff]
    %v610 = vld [vmem:[#allocation5 + $0xf30] sm:$0xff]
    %v611 = vld [vmem:[#allocation5 + $0xf38] sm:$0xff]
    %v612 = vld [vmem:[#allocation5 + $0xf40] sm:$0xff]
    %v613 = vld [vmem:[#allocation5 + $0xf48] sm:$0xff]
    %v614 = vld [vmem:[#allocation5 + $0xf50] sm:$0xff]
    %v615 = vld [vmem:[#allocation5 + $0xf58] sm:$0xff]
    %v616 = vld [vmem:[#allocation5 + $0xf60] sm:$0xff]
    %v617 = vld [vmem:[#allocation5 + $0xf68] sm:$0xff]
    %v618 = vld [vmem:[#allocation5 + $0xf70] sm:$0xff]
    %v619 = vld [vmem:[#allocation5 + $0xf78] sm:$0xff]
    %v620 = vld [vmem:[#allocation5 + $0xf80] sm:$0xff]
    %v621 = vld [vmem:[#allocation5 + $0xf88] sm:$0xff]
    %v622 = vld [vmem:[#allocation5 + $0xf90] sm:$0xff]
    %v623 = vld [vmem:[#allocation5 + $0xf98] sm:$0xff]
    %v624 = vld [vmem:[#allocation5 + $0xfa0] sm:$0xff]
    %v625 = vld [vmem:[#allocation5 + $0xfa8] sm:$0xff]
    %v626 = vld [vmem:[#allocation5 + $0xfb0] sm:$0xff]
    %v627 = vld [vmem:[#allocation5 + $0xfb8] sm:$0xff]
    %v628 = vld [vmem:[#allocation5 + $0xfc0] sm:$0xff]
    %v629 = vld [vmem:[#allocation5 + $0xfc8] sm:$0xff]
    %v630 = vld [vmem:[#allocation5 + $0xfd0] sm:$0xff]
    %v631 = vld [vmem:[#allocation5 + $0xfd8] sm:$0xff]
    %v632 = vld [vmem:[#allocation5 + $0xfe0] sm:$0xff]
    %v633 = vld [vmem:[#allocation5 + $0xfe8] sm:$0xff]
    %v634 = vld [vmem:[#allocation5 + $0xff0] sm:$0xff]
    %v635 = vld [vmem:[#allocation5 + $0xff8] sm:$0xff]
    %v636 = vld [vmem:[#allocation5 + $0x1000] sm:$0xff]
    %v637 = vld [vmem:[#allocation5 + $0x1008] sm:$0xff]
    %v638 = vld [vmem:[#allocation5 + $0x1010] sm:$0xff]
    %v639 = vld [vmem:[#allocation5 + $0x1018] sm:$0xff]
    %v640 = vld [vmem:[#allocation5 + $0x1020] sm:$0xff]
    %v641 = vld [vmem:[#allocation5 + $0x1028] sm:$0xff]
    %v642 = vld [vmem:[#allocation5 + $0x1030] sm:$0xff]
    %v643 = vld [vmem:[#allocation5 + $0x1038] sm:$0xff]
    %v644 = vld [vmem:[#allocation5 + $0x1040] sm:$0xff]
    %v645 = vld [vmem:[#allocation5 + $0x1048] sm:$0xff]
    %v646 = vld [vmem:[#allocation5 + $0x1050] sm:$0xff]
    %v647 = vld [vmem:[#allocation5 + $0x1058] sm:$0xff]
    %v648 = vld [vmem:[#allocation5 + $0x1060] sm:$0xff]
    %v649 = vld [vmem:[#allocation5 + $0x1068] sm:$0xff]
    %v650 = vld [vmem:[#allocation5 + $0x1070] sm:$0xff]
    %v651 = vld [vmem:[#allocation5 + $0x1078] sm:$0xff]
    %v652 = vld [vmem:[#allocation5 + $0x1080] sm:$0xff]
    %v653 = vld [vmem:[#allocation5 + $0x1088] sm:$0xff]
    %v654 = vld [vmem:[#allocation5 + $0x1090] sm:$0xff]
    %v655 = vld [vmem:[#allocation5 + $0x1098] sm:$0xff]
    %v656 = vld [vmem:[#allocation5 + $0x10a0] sm:$0xff]
    %v657 = vld [vmem:[#allocation5 + $0x10a8] sm:$0xff]
    %v658 = vld [vmem:[#allocation5 + $0x10b0] sm:$0xff]
    %v659 = vld [vmem:[#allocation5 + $0x10b8] sm:$0xff]
    %v660 = vld [vmem:[#allocation5 + $0x10c0] sm:$0xff]
    %v661 = vld [vmem:[#allocation5 + $0x10c8] sm:$0xff]
    %v662 = vld [vmem:[#allocation5 + $0x10d0] sm:$0xff]
    %v663 = vld [vmem:[#allocation5 + $0x10d8] sm:$0xff]
    %v664 = vld [vmem:[#allocation5 + $0x10e0] sm:$0xff]
    %v665 = vld [vmem:[#allocation5 + $0x10e8] sm:$0xff]
    %v666 = vld [vmem:[#allocation5 + $0x10f0] sm:$0xff]
    %v667 = vld [vmem:[#allocation5 + $0x10f8] sm:$0xff]
    %v668 = vld [vmem:[#allocation5 + $0x1100] sm:$0xff]
    %v669 = vld [vmem:[#allocation5 + $0x1108] sm:$0xff]
    %v670 = vld [vmem:[#allocation5 + $0x1110] sm:$0xff]
    %v671 = vld [vmem:[#allocation5 + $0x1118] sm:$0xff]
    %v672 = vld [vmem:[#allocation5 + $0x1120] sm:$0xff]
    %v673 = vld [vmem:[#allocation5 + $0x1128] sm:$0xff]
    %v674 = vld [vmem:[#allocation5 + $0x1130] sm:$0xff]
    %v675 = vld [vmem:[#allocation5 + $0x1138] sm:$0xff]
    %v676 = vld [vmem:[#allocation5 + $0x1140] sm:$0xff]
    %v677 = vld [vmem:[#allocation5 + $0x1148] sm:$0xff]
    %v678 = vld [vmem:[#allocation5 + $0x1150] sm:$0xff]
    %v679 = vld [vmem:[#allocation5 + $0x1158] sm:$0xff]
    %v680 = vld [vmem:[#allocation5 + $0x1160] sm:$0xff]
    %v681 = vld [vmem:[#allocation5 + $0x1168] sm:$0xff]
    %v682 = vld [vmem:[#allocation5 + $0x1170] sm:$0xff]
    %v683 = vld [vmem:[#allocation5 + $0x1178] sm:$0xff]
    %v684 = vld [vmem:[#allocation5 + $0x1180] sm:$0xff]
    %v685 = vld [vmem:[#allocation5 + $0x1188] sm:$0xff]
    %v686 = vld [vmem:[#allocation5 + $0x1190] sm:$0xff]
    %v687 = vld [vmem:[#allocation5 + $0x1198] sm:$0xff]
    %v688 = vld [vmem:[#allocation5 + $0x11a0] sm:$0xff]
    %v689 = vld [vmem:[#allocation5 + $0x11a8] sm:$0xff]
    %v690 = vld [vmem:[#allocation5 + $0x11b0] sm:$0xff]
    %v691 = vld [vmem:[#allocation5 + $0x11b8] sm:$0xff]
    %v692 = vld [vmem:[#allocation5 + $0x11c0] sm:$0xff]
    %v693 = vld [vmem:[#allocation5 + $0x11c8] sm:$0xff]
    %v694 = vld [vmem:[#allocation5 + $0x11d0] sm:$0xff]
    %v695 = vld [vmem:[#allocation5 + $0x11d8] sm:$0xff]
    %v696 = vld [vmem:[#allocation5 + $0x11e0] sm:$0xff]
    %v697 = vld [vmem:[#allocation5 + $0x11e8] sm:$0xff]
    %v698 = vld [vmem:[#allocation5 + $0x11f0] sm:$0xff]
    %v699 = vld [vmem:[#allocation5 + $0x11f8] sm:$0xff]
    %v700 = vld [vmem:[#allocation5 + $0x1200] sm:$0xff]
    %v701 = vld [vmem:[#allocation5 + $0x1208] sm:$0xff]
    %v702 = vld [vmem:[#allocation5 + $0x1210] sm:$0xff]
    %v703 = vld [vmem:[#allocation5 + $0x1218] sm:$0xff]
    %v704 = vld [vmem:[#allocation5 + $0x1220] sm:$0xff]
    %v705 = vld [vmem:[#allocation5 + $0x1228] sm:$0xff]
    %v706 = vld [vmem:[#allocation5 + $0x1230] sm:$0xff]
    %v707 = vld [vmem:[#allocation5 + $0x1238] sm:$0xff]
    %v708 = vld [vmem:[#allocation5 + $0x1240] sm:$0xff]
    %v709 = vld [vmem:[#allocation5 + $0x1248] sm:$0xff]
    %v710 = vld [vmem:[#allocation5 + $0x1250] sm:$0xff]
    %v711 = vld [vmem:[#allocation5 + $0x1258] sm:$0xff]
    %v712 = vld [vmem:[#allocation5 + $0x1260] sm:$0xff]
    %v713 = vld [vmem:[#allocation5 + $0x1268] sm:$0xff]
    %v714 = vld [vmem:[#allocation5 + $0x1270] sm:$0xff]
    %v715 = vld [vmem:[#allocation5 + $0x1278] sm:$0xff]
    %v716 = vld [vmem:[#allocation5 + $0x1280] sm:$0xff]
    %v717 = vld [vmem:[#allocation5 + $0x1288] sm:$0xff]
    %v718 = vld [vmem:[#allocation5 + $0x1290] sm:$0xff]
    %v719 = vld [vmem:[#allocation5 + $0x1298] sm:$0xff]
    %v720 = vld [vmem:[#allocation5 + $0x12a0] sm:$0xff]
    %v721 = vld [vmem:[#allocation5 + $0x12a8] sm:$0xff]
    %v722 = vld [vmem:[#allocation5 + $0x12b0] sm:$0xff]
    %v723 = vld [vmem:[#allocation5 + $0x12b8] sm:$0xff]
    %v724 = vld [vmem:[#allocation5 + $0x12c0] sm:$0xff]
    %v725 = vld [vmem:[#allocation5 + $0x12c8] sm:$0xff]
    %v726 = vld [vmem:[#allocation5 + $0x12d0] sm:$0xff]
    %v727 = vld [vmem:[#allocation5 + $0x12d8] sm:$0xff]
    %v728 = vld [vmem:[#allocation5 + $0x12e0] sm:$0xff]
    %v729 = vld [vmem:[#allocation5 + $0x12e8] sm:$0xff]
    %v730 = vld [vmem:[#allocation5 + $0x12f0] sm:$0xff]
    %v731 = vld [vmem:[#allocation5 + $0x12f8] sm:$0xff]
    %v732 = vld [vmem:[#allocation5 + $0x1300] sm:$0xff]
    %v733 = vld [vmem:[#allocation5 + $0x1308] sm:$0xff]
    %v734 = vld [vmem:[#allocation5 + $0x1310] sm:$0xff]
    %v735 = vld [vmem:[#allocation5 + $0x1318] sm:$0xff]
    %v736 = vld [vmem:[#allocation5 + $0x1320] sm:$0xff]
    %v737 = vld [vmem:[#allocation5 + $0x1328] sm:$0xff]
    %v738 = vld [vmem:[#allocation5 + $0x1330] sm:$0xff]
    %v739 = vld [vmem:[#allocation5 + $0x1338] sm:$0xff]
    %v740 = vld [vmem:[#allocation5 + $0x1340] sm:$0xff]
    %v741 = vld [vmem:[#allocation5 + $0x1348] sm:$0xff]
    %v742 = vld [vmem:[#allocation5 + $0x1350] sm:$0xff]
    %v743 = vld [vmem:[#allocation5 + $0x1358] sm:$0xff]
    %v744 = vld [vmem:[#allocation5 + $0x1360] sm:$0xff]
    %v745 = vld [vmem:[#allocation5 + $0x1368] sm:$0xff]
    %v746 = vld [vmem:[#allocation5 + $0x1370] sm:$0xff]
    %v747 = vld [vmem:[#allocation5 + $0x1378] sm:$0xff]
    %v748 = vld [vmem:[#allocation5 + $0x1380] sm:$0xff]
    %v749 = vld [vmem:[#allocation5 + $0x1388] sm:$0xff]
    %v750 = vld [vmem:[#allocation5 + $0x1390] sm:$0xff]
    %v751 = vld [vmem:[#allocation5 + $0x1398] sm:$0xff]
    %v752 = vld [vmem:[#allocation5 + $0x13a0] sm:$0xff]
    %v753 = vld [vmem:[#allocation5 + $0x13a8] sm:$0xff]
    %v754 = vld [vmem:[#allocation5 + $0x13b0] sm:$0xff]
    %v755 = vld [vmem:[#allocation5 + $0x13b8] sm:$0xff]
    %v756 = vld [vmem:[#allocation5 + $0x13c0] sm:$0xff]
    %v757 = vld [vmem:[#allocation5 + $0x13c8] sm:$0xff]
    %v758 = vld [vmem:[#allocation5 + $0x13d0] sm:$0xff]
    %v759 = vld [vmem:[#allocation5 + $0x13d8] sm:$0xff]
    %v760 = vld [vmem:[#allocation5 + $0x13e0] sm:$0xff]
    %v761 = vld [vmem:[#allocation5 + $0x13e8] sm:$0xff]
    %v762 = vld [vmem:[#allocation5 + $0x13f0] sm:$0xff]
    %v763 = vld [vmem:[#allocation5 + $0x13f8] sm:$0xff]
    %v764 = vld [vmem:[#allocation7] sm:$0xf]
    %v766 = vlaneseq
    %v767 = vshrl.u32 %v766, 7
    %v768 = vsub.s32 0, %v767
    %v769 = vrot.slane %v764, %v768
    %v770 = vlaneseq
    %v771 = vshrl.u32 %v770, 7
    %v772 = vsub.s32 1, %v771
    %v773 = vrot.slane %v764, %v772
    %v774 = vlaneseq
    %v775 = vshrl.u32 %v774, 7
    %v776 = vsub.s32 2, %v775
    %v777 = vrot.slane %v764, %v776
    %v778 = vlaneseq
    %v779 = vshrl.u32 %v778, 7
    %v780 = vsub.s32 3, %v779
    %v781 = vrot.slane %v764, %v780
    %786 = vmatprep.subr.mxu0 %v125
    %787 = vmatpush1.msra.mxu0 %v124
    %788 = vmatprep.subr.mxu0 %v129
    %789 = vmatpush1.msra.mxu0 %v128
    %790 = vmatprep.subr.mxu0 %v133
    %791 = vmatpush1.msra.mxu0 %v132
    %792 = vmatprep.subr.mxu0 %v137
    %793 = vmatpush1.msra.mxu0 %v136
    %794 = vmatprep.subr.mxu0 %v141
    %795 = vmatpush1.msra.mxu0 %v140
    %796 = vmatprep.subr.mxu0 %v145
    %797 = vmatpush1.msra.mxu0 %v144
    %798 = vmatprep.subr.mxu0 %v149
    %799 = vmatpush1.msra.mxu0 %v148
    %800 = vmatprep.subr.mxu0 %v153
    %801 = vmatpush1.msra.mxu0 %v152
    %802 = vmatprep.subr.mxu0 %v157
    %803 = vmatpush1.msra.mxu0 %v156
    %804 = vmatprep.subr.mxu0 %v161
    %805 = vmatpush1.msra.mxu0 %v160
    %806 = vmatprep.subr.mxu0 %v165
    %807 = vmatpush1.msra.mxu0 %v164
    %808 = vmatprep.subr.mxu0 %v169
    %809 = vmatpush1.msra.mxu0 %v168
    %810 = vmatprep.subr.mxu0 %v173
    %811 = vmatpush1.msra.mxu0 %v172
    %812 = vmatprep.subr.mxu0 %v177
    %813 = vmatpush1.msra.mxu0 %v176
    %814 = vmatprep.subr.mxu0 %v181
    %815 = vmatpush1.msra.mxu0 %v180
    %816 = vmatprep.subr.mxu0 %v185
    %817 = vmatpush1.msra.mxu0 %v184
    %818 = vmatprep.subr.mxu0 %v189
    %819 = vmatpush1.msra.mxu0 %v188
    %820 = vmatprep.subr.mxu0 %v193
    %821 = vmatpush1.msra.mxu0 %v192
    %822 = vmatprep.subr.mxu0 %v197
    %823 = vmatpush1.msra.mxu0 %v196
    %824 = vmatprep.subr.mxu0 %v201
    %825 = vmatpush1.msra.mxu0 %v200
    %826 = vmatprep.subr.mxu0 %v205
    %827 = vmatpush1.msra.mxu0 %v204
    %828 = vmatprep.subr.mxu0 %v209
    %829 = vmatpush1.msra.mxu0 %v208
    %830 = vmatprep.subr.mxu0 %v213
    %831 = vmatpush1.msra.mxu0 %v212
    %832 = vmatprep.subr.mxu0 %v217
    %833 = vmatpush1.msra.mxu0 %v216
    %834 = vmatprep.subr.mxu0 %v221
    %835 = vmatpush1.msra.mxu0 %v220
    %836 = vmatprep.subr.mxu0 %v225
    %837 = vmatpush1.msra.mxu0 %v224
    %838 = vmatprep.subr.mxu0 %v229
    %839 = vmatpush1.msra.mxu0 %v228
    %840 = vmatprep.subr.mxu0 %v233
    %841 = vmatpush1.msra.mxu0 %v232
    %842 = vmatprep.subr.mxu0 %v237
    %843 = vmatpush1.msra.mxu0 %v236
    %844 = vmatprep.subr.mxu0 %v241
    %845 = vmatpush1.msra.mxu0 %v240
    %846 = vmatprep.subr.mxu0 %v245
    %847 = vmatpush1.msra.mxu0 %v244
    %848 = vmatprep.subr.mxu0 %v249
    %849 = vmatpush1.msra.mxu0 %v248
    %850 = vmatprep.mubr.f32.mxu0 %v115
    %851 = vmatmul.mubr.f32.gmra.mrb[0].mxu0 %v114
    %v852 = vpop.f32.mrb[0].mxu0
    %v853 = vadd.f32 %v769, %v852
    %v854 = vpop.f32.mrb[0].mxu0
    %v855 = vadd.f32 %v773, %v854
    %856 = vdwg.mxu0
    %857 = vmatprep.subr.mxu0 %v253
    %858 = vmatpush1.msra.mxu0 %v252
    %859 = vmatprep.subr.mxu0 %v257
    %860 = vmatpush1.msra.mxu0 %v256
    %861 = vmatprep.subr.mxu0 %v261
    %862 = vmatpush1.msra.mxu0 %v260
    %863 = vmatprep.subr.mxu0 %v265
    %864 = vmatpush1.msra.mxu0 %v264
    %865 = vmatprep.subr.mxu0 %v269
    %866 = vmatpush1.msra.mxu0 %v268
    %867 = vmatprep.subr.mxu0 %v273
    %868 = vmatpush1.msra.mxu0 %v272
    %869 = vmatprep.subr.mxu0 %v277
    %870 = vmatpush1.msra.mxu0 %v276
    %871 = vmatprep.subr.mxu0 %v281
    %872 = vmatpush1.msra.mxu0 %v280
    %873 = vmatprep.subr.mxu0 %v285
    %874 = vmatpush1.msra.mxu0 %v284
    %875 = vmatprep.subr.mxu0 %v289
    %876 = vmatpush1.msra.mxu0 %v288
    %877 = vmatprep.subr.mxu0 %v293
    %878 = vmatpush1.msra.mxu0 %v292
    %879 = vmatprep.subr.mxu0 %v297
    %880 = vmatpush1.msra.mxu0 %v296
    %881 = vmatprep.subr.mxu0 %v301
    %882 = vmatpush1.msra.mxu0 %v300
    %883 = vmatprep.subr.mxu0 %v305
    %884 = vmatpush1.msra.mxu0 %v304
    %885 = vmatprep.subr.mxu0 %v309
    %886 = vmatpush1.msra.mxu0 %v308
    %887 = vmatprep.subr.mxu0 %v313
    %888 = vmatpush1.msra.mxu0 %v312
    %889 = vmatprep.subr.mxu0 %v317
    %890 = vmatpush1.msra.mxu0 %v316
    %891 = vmatprep.subr.mxu0 %v321
    %892 = vmatpush1.msra.mxu0 %v320
    %893 = vmatprep.subr.mxu0 %v325
    %894 = vmatpush1.msra.mxu0 %v324
    %895 = vmatprep.subr.mxu0 %v329
    %896 = vmatpush1.msra.mxu0 %v328
    %897 = vmatprep.subr.mxu0 %v333
    %898 = vmatpush1.msra.mxu0 %v332
    %899 = vmatprep.subr.mxu0 %v337
    %900 = vmatpush1.msra.mxu0 %v336
    %901 = vmatprep.subr.mxu0 %v341
    %902 = vmatpush1.msra.mxu0 %v340
    %903 = vmatprep.subr.mxu0 %v345
    %904 = vmatpush1.msra.mxu0 %v344
    %905 = vmatprep.subr.mxu0 %v349
    %906 = vmatpush1.msra.mxu0 %v348
    %907 = vmatprep.subr.mxu0 %v353
    %908 = vmatpush1.msra.mxu0 %v352
    %909 = vmatprep.subr.mxu0 %v357
    %910 = vmatpush1.msra.mxu0 %v356
    %911 = vmatprep.subr.mxu0 %v361
    %912 = vmatpush1.msra.mxu0 %v360
    %913 = vmatprep.subr.mxu0 %v365
    %914 = vmatpush1.msra.mxu0 %v364
    %915 = vmatprep.subr.mxu0 %v369
    %916 = vmatpush1.msra.mxu0 %v368
    %917 = vmatprep.subr.mxu0 %v373
    %918 = vmatpush1.msra.mxu0 %v372
    %919 = vmatprep.subr.mxu0 %v377
    %920 = vmatpush1.msra.mxu0 %v376
    %921 = vmatprep.mubr.f32.mxu0 %v117
    %922 = vmatmul.mubr.f32.gmra.mrb[0].mxu0 %v116
    %v923 = vpop.f32.mrb[0].mxu0
    %v924 = vadd.f32 %v853, %v923
    %v925 = vpop.f32.mrb[0].mxu0
    %v926 = vadd.f32 %v855, %v925
    %927 = vdwg.mxu0
    %928 = vmatprep.subr.mxu0 %v381
    %929 = vmatpush1.msra.mxu0 %v380
    %930 = vmatprep.subr.mxu0 %v385
    %931 = vmatpush1.msra.mxu0 %v384
    %932 = vmatprep.subr.mxu0 %v389
    %933 = vmatpush1.msra.mxu0 %v388
    %934 = vmatprep.subr.mxu0 %v393
    %935 = vmatpush1.msra.mxu0 %v392
    %936 = vmatprep.subr.mxu0 %v397
    %937 = vmatpush1.msra.mxu0 %v396
    %938 = vmatprep.subr.mxu0 %v401
    %939 = vmatpush1.msra.mxu0 %v400
    %940 = vmatprep.subr.mxu0 %v405
    %941 = vmatpush1.msra.mxu0 %v404
    %942 = vmatprep.subr.mxu0 %v409
    %943 = vmatpush1.msra.mxu0 %v408
    %944 = vmatprep.subr.mxu0 %v413
    %945 = vmatpush1.msra.mxu0 %v412
    %946 = vmatprep.subr.mxu0 %v417
    %947 = vmatpush1.msra.mxu0 %v416
    %948 = vmatprep.subr.mxu0 %v421
    %949 = vmatpush1.msra.mxu0 %v420
    %950 = vmatprep.subr.mxu0 %v425
    %951 = vmatpush1.msra.mxu0 %v424
    %952 = vmatprep.subr.mxu0 %v429
    %953 = vmatpush1.msra.mxu0 %v428
    %954 = vmatprep.subr.mxu0 %v433
    %955 = vmatpush1.msra.mxu0 %v432
    %956 = vmatprep.subr.mxu0 %v437
    %957 = vmatpush1.msra.mxu0 %v436
    %958 = vmatprep.subr.mxu0 %v441
    %959 = vmatpush1.msra.mxu0 %v440
    %960 = vmatprep.subr.mxu0 %v445
    %961 = vmatpush1.msra.mxu0 %v444
    %962 = vmatprep.subr.mxu0 %v449
    %963 = vmatpush1.msra.mxu0 %v448
    %964 = vmatprep.subr.mxu0 %v453
    %965 = vmatpush1.msra.mxu0 %v452
    %966 = vmatprep.subr.mxu0 %v457
    %967 = vmatpush1.msra.mxu0 %v456
    %968 = vmatprep.subr.mxu0 %v461
    %969 = vmatpush1.msra.mxu0 %v460
    %970 = vmatprep.subr.mxu0 %v465
    %971 = vmatpush1.msra.mxu0 %v464
    %972 = vmatprep.subr.mxu0 %v469
    %973 = vmatpush1.msra.mxu0 %v468
    %974 = vmatprep.subr.mxu0 %v473
    %975 = vmatpush1.msra.mxu0 %v472
    %976 = vmatprep.subr.mxu0 %v477
    %977 = vmatpush1.msra.mxu0 %v476
    %978 = vmatprep.subr.mxu0 %v481
    %979 = vmatpush1.msra.mxu0 %v480
    %980 = vmatprep.subr.mxu0 %v485
    %981 = vmatpush1.msra.mxu0 %v484
    %982 = vmatprep.subr.mxu0 %v489
    %983 = vmatpush1.msra.mxu0 %v488
    %984 = vmatprep.subr.mxu0 %v493
    %985 = vmatpush1.msra.mxu0 %v492
    %986 = vmatprep.subr.mxu0 %v497
    %987 = vmatpush1.msra.mxu0 %v496
    %988 = vmatprep.subr.mxu0 %v501
    %989 = vmatpush1.msra.mxu0 %v500
    %990 = vmatprep.subr.mxu0 %v505
    %991 = vmatpush1.msra.mxu0 %v504
    %992 = vmatprep.mubr.f32.mxu0 %v119
    %993 = vmatmul.mubr.f32.gmra.mrb[0].mxu0 %v118
    %v994 = vpop.f32.mrb[0].mxu0
    %v995 = vadd.f32 %v924, %v994
    %v996 = vpop.f32.mrb[0].mxu0
    %v997 = vadd.f32 %v926, %v996
    %998 = vdwg.mxu0
    %999 = vmatprep.subr.mxu0 %v509
    %1000 = vmatpush1.msra.mxu0 %v508
    %1001 = vmatprep.subr.mxu0 %v513
    %1002 = vmatpush1.msra.mxu0 %v512
    %1003 = vmatprep.subr.mxu0 %v517
    %1004 = vmatpush1.msra.mxu0 %v516
    %1005 = vmatprep.subr.mxu0 %v521
    %1006 = vmatpush1.msra.mxu0 %v520
    %1007 = vmatprep.subr.mxu0 %v525
    %1008 = vmatpush1.msra.mxu0 %v524
    %1009 = vmatprep.subr.mxu0 %v529
    %1010 = vmatpush1.msra.mxu0 %v528
    %1011 = vmatprep.subr.mxu0 %v533
    %1012 = vmatpush1.msra.mxu0 %v532
    %1013 = vmatprep.subr.mxu0 %v537
    %1014 = vmatpush1.msra.mxu0 %v536
    %1015 = vmatprep.subr.mxu0 %v541
    %1016 = vmatpush1.msra.mxu0 %v540
    %1017 = vmatprep.subr.mxu0 %v545
    %1018 = vmatpush1.msra.mxu0 %v544
    %1019 = vmatprep.subr.mxu0 %v549
    %1020 = vmatpush1.msra.mxu0 %v548
    %1021 = vmatprep.subr.mxu0 %v553
    %1022 = vmatpush1.msra.mxu0 %v552
    %1023 = vmatprep.subr.mxu0 %v557
    %1024 = vmatpush1.msra.mxu0 %v556
    %1025 = vmatprep.subr.mxu0 %v561
    %1026 = vmatpush1.msra.mxu0 %v560
    %1027 = vmatprep.subr.mxu0 %v565
    %1028 = vmatpush1.msra.mxu0 %v564
    %1029 = vmatprep.subr.mxu0 %v569
    %1030 = vmatpush1.msra.mxu0 %v568
    %1031 = vmatprep.subr.mxu0 %v573
    %1032 = vmatpush1.msra.mxu0 %v572
    %1033 = vmatprep.subr.mxu0 %v577
    %1034 = vmatpush1.msra.mxu0 %v576
    %1035 = vmatprep.subr.mxu0 %v581
    %1036 = vmatpush1.msra.mxu0 %v580
    %1037 = vmatprep.subr.mxu0 %v585
    %1038 = vmatpush1.msra.mxu0 %v584
    %1039 = vmatprep.subr.mxu0 %v589
    %1040 = vmatpush1.msra.mxu0 %v588
    %1041 = vmatprep.subr.mxu0 %v593
    %1042 = vmatpush1.msra.mxu0 %v592
    %1043 = vmatprep.subr.mxu0 %v597
    %1044 = vmatpush1.msra.mxu0 %v596
    %1045 = vmatprep.subr.mxu0 %v601
    %1046 = vmatpush1.msra.mxu0 %v600
    %1047 = vmatprep.subr.mxu0 %v605
    %1048 = vmatpush1.msra.mxu0 %v604
    %1049 = vmatprep.subr.mxu0 %v609
    %1050 = vmatpush1.msra.mxu0 %v608
    %1051 = vmatprep.subr.mxu0 %v613
    %1052 = vmatpush1.msra.mxu0 %v612
    %1053 = vmatprep.subr.mxu0 %v617
    %1054 = vmatpush1.msra.mxu0 %v616
    %1055 = vmatprep.subr.mxu0 %v621
    %1056 = vmatpush1.msra.mxu0 %v620
    %1057 = vmatprep.subr.mxu0 %v625
    %1058 = vmatpush1.msra.mxu0 %v624
    %1059 = vmatprep.subr.mxu0 %v629
    %1060 = vmatpush1.msra.mxu0 %v628
    %1061 = vmatprep.subr.mxu0 %v633
    %1062 = vmatpush1.msra.mxu0 %v632
    %1063 = vmatprep.mubr.f32.mxu0 %v121
    %1064 = vmatmul.mubr.f32.gmra.mrb[0].mxu0 %v120
    %v1065 = vpop.f32.mrb[0].mxu0
    %v1066 = vadd.f32 %v995, %v1065
    %v1067 = vpop.f32.mrb[0].mxu0
    %v1068 = vadd.f32 %v997, %v1067
    %1069 = vdwg.mxu0
    %1070 = vmatprep.subr.mxu0 %v637
    %1071 = vmatpush1.msra.mxu0 %v636
    %1072 = vmatprep.subr.mxu0 %v641
    %1073 = vmatpush1.msra.mxu0 %v640
    %1074 = vmatprep.subr.mxu0 %v645
    %1075 = vmatpush1.msra.mxu0 %v644
    %1076 = vmatprep.subr.mxu0 %v649
    %1077 = vmatpush1.msra.mxu0 %v648
    %1078 = vmatprep.subr.mxu0 %v653
    %1079 = vmatpush1.msra.mxu0 %v652
    %1080 = vmatprep.subr.mxu0 %v657
    %1081 = vmatpush1.msra.mxu0 %v656
    %1082 = vmatprep.subr.mxu0 %v661
    %1083 = vmatpush1.msra.mxu0 %v660
    %1084 = vmatprep.subr.mxu0 %v665
    %1085 = vmatpush1.msra.mxu0 %v664
    %1086 = vmatprep.subr.mxu0 %v669
    %1087 = vmatpush1.msra.mxu0 %v668
    %1088 = vmatprep.subr.mxu0 %v673
    %1089 = vmatpush1.msra.mxu0 %v672
    %1090 = vmatprep.subr.mxu0 %v677
    %1091 = vmatpush1.msra.mxu0 %v676
    %1092 = vmatprep.subr.mxu0 %v681
    %1093 = vmatpush1.msra.mxu0 %v680
    %1094 = vmatprep.subr.mxu0 %v685
    %1095 = vmatpush1.msra.mxu0 %v684
    %1096 = vmatprep.subr.mxu0 %v689
    %1097 = vmatpush1.msra.mxu0 %v688
    %1098 = vmatprep.subr.mxu0 %v693
    %1099 = vmatpush1.msra.mxu0 %v692
    %1100 = vmatprep.subr.mxu0 %v697
    %1101 = vmatpush1.msra.mxu0 %v696
    %1102 = vmatprep.subr.mxu0 %v701
    %1103 = vmatpush1.msra.mxu0 %v700
    %1104 = vmatprep.subr.mxu0 %v705
    %1105 = vmatpush1.msra.mxu0 %v704
    %1106 = vmatprep.subr.mxu0 %v709
    %1107 = vmatpush1.msra.mxu0 %v708
    %1108 = vmatprep.subr.mxu0 %v713
    %1109 = vmatpush1.msra.mxu0 %v712
    %1110 = vmatprep.subr.mxu0 %v717
    %1111 = vmatpush1.msra.mxu0 %v716
    %1112 = vmatprep.subr.mxu0 %v721
    %1113 = vmatpush1.msra.mxu0 %v720
    %1114 = vmatprep.subr.mxu0 %v725
    %1115 = vmatpush1.msra.mxu0 %v724
    %1116 = vmatprep.subr.mxu0 %v729
    %1117 = vmatpush1.msra.mxu0 %v728
    %1118 = vmatprep.subr.mxu0 %v733
    %1119 = vmatpush1.msra.mxu0 %v732
    %1120 = vmatprep.subr.mxu0 %v737
    %1121 = vmatpush1.msra.mxu0 %v736
    %1122 = vmatprep.subr.mxu0 %v741
    %1123 = vmatpush1.msra.mxu0 %v740
    %1124 = vmatprep.subr.mxu0 %v745
    %1125 = vmatpush1.msra.mxu0 %v744
    %1126 = vmatprep.subr.mxu0 %v749
    %1127 = vmatpush1.msra.mxu0 %v748
    %1128 = vmatprep.subr.mxu0 %v753
    %1129 = vmatpush1.msra.mxu0 %v752
    %1130 = vmatprep.subr.mxu0 %v757
    %1131 = vmatpush1.msra.mxu0 %v756
    %1132 = vmatprep.subr.mxu0 %v761
    %1133 = vmatpush1.msra.mxu0 %v760
    %1134 = vmatprep.mubr.f32.mxu0 %v123
    %1135 = vmatmul.mubr.f32.gmra.mrb[0].mxu0 %v122
    %v1136 = vpop.f32.mrb[0].mxu0
    %v1137 = vadd.f32 %v1066, %v1136
    %v1138 = vpop.f32.mrb[0].mxu0
    %v1139 = vadd.f32 %v1068, %v1138
    %1140 = vdwg.mxu0
    %1141 = vmatprep.subr.mxu0 %v127
    %1142 = vmatpush1.msra.mxu0 %v126
    %1143 = vmatprep.subr.mxu0 %v131
    %1144 = vmatpush1.msra.mxu0 %v130
    %1145 = vmatprep.subr.mxu0 %v135
    %1146 = vmatpush1.msra.mxu0 %v134
    %1147 = vmatprep.subr.mxu0 %v139
    %1148 = vmatpush1.msra.mxu0 %v138
    %1149 = vmatprep.subr.mxu0 %v143
    %1150 = vmatpush1.msra.mxu0 %v142
    %1151 = vmatprep.subr.mxu0 %v147
    %1152 = vmatpush1.msra.mxu0 %v146
    %1153 = vmatprep.subr.mxu0 %v151
    %1154 = vmatpush1.msra.mxu0 %v150
    %1155 = vmatprep.subr.mxu0 %v155
    %1156 = vmatpush1.msra.mxu0 %v154
    %1157 = vmatprep.subr.mxu0 %v159
    %1158 = vmatpush1.msra.mxu0 %v158
    %1159 = vmatprep.subr.mxu0 %v163
    %1160 = vmatpush1.msra.mxu0 %v162
    %1161 = vmatprep.subr.mxu0 %v167
    %1162 = vmatpush1.msra.mxu0 %v166
    %1163 = vmatprep.subr.mxu0 %v171
    %1164 = vmatpush1.msra.mxu0 %v170
    %1165 = vmatprep.subr.mxu0 %v175
    %1166 = vmatpush1.msra.mxu0 %v174
    %1167 = vmatprep.subr.mxu0 %v179
    %1168 = vmatpush1.msra.mxu0 %v178
    %1169 = vmatprep.subr.mxu0 %v183
    %1170 = vmatpush1.msra.mxu0 %v182
    %1171 = vmatprep.subr.mxu0 %v187
    %1172 = vmatpush1.msra.mxu0 %v186
    %1173 = vmatprep.subr.mxu0 %v191
    %1174 = vmatpush1.msra.mxu0 %v190
    %1175 = vmatprep.subr.mxu0 %v195
    %1176 = vmatpush1.msra.mxu0 %v194
    %1177 = vmatprep.subr.mxu0 %v199
    %1178 = vmatpush1.msra.mxu0 %v198
    %1179 = vmatprep.subr.mxu0 %v203
    %1180 = vmatpush1.msra.mxu0 %v202
    %1181 = vmatprep.subr.mxu0 %v207
    %1182 = vmatpush1.msra.mxu0 %v206
    %1183 = vmatprep.subr.mxu0 %v211
    %1184 = vmatpush1.msra.mxu0 %v210
    %1185 = vmatprep.subr.mxu0 %v215
    %1186 = vmatpush1.msra.mxu0 %v214
    %1187 = vmatprep.subr.mxu0 %v219
    %1188 = vmatpush1.msra.mxu0 %v218
    %1189 = vmatprep.subr.mxu0 %v223
    %1190 = vmatpush1.msra.mxu0 %v222
    %1191 = vmatprep.subr.mxu0 %v227
    %1192 = vmatpush1.msra.mxu0 %v226
    %1193 = vmatprep.subr.mxu0 %v231
    %1194 = vmatpush1.msra.mxu0 %v230
    %1195 = vmatprep.subr.mxu0 %v235
    %1196 = vmatpush1.msra.mxu0 %v234
    %1197 = vmatprep.subr.mxu0 %v239
    %1198 = vmatpush1.msra.mxu0 %v238
    %1199 = vmatprep.subr.mxu0 %v243
    %1200 = vmatpush1.msra.mxu0 %v242
    %1201 = vmatprep.subr.mxu0 %v247
    %1202 = vmatpush1.msra.mxu0 %v246
    %1203 = vmatprep.subr.mxu0 %v251
    %1204 = vmatpush1.msra.mxu0 %v250
    %1205 = vmatprep.mubr.f32.mxu0 %v115
    %1206 = vmatmul.mubr.f32.gmra.mrb[0].mxu0 %v114
    %v1207 = vpop.f32.mrb[0].mxu0
    %v1208 = vadd.f32 %v777, %v1207
    %v1209 = vpop.f32.mrb[0].mxu0
    %v1210 = vadd.f32 %v781, %v1209
    %1211 = vdwg.mxu0
    %1212 = vmatprep.subr.mxu0 %v255
    %1213 = vmatpush1.msra.mxu0 %v254
    %1214 = vmatprep.subr.mxu0 %v259
    %1215 = vmatpush1.msra.mxu0 %v258
    %1216 = vmatprep.subr.mxu0 %v263
    %1217 = vmatpush1.msra.mxu0 %v262
    %1218 = vmatprep.subr.mxu0 %v267
    %1219 = vmatpush1.msra.mxu0 %v266
    %1220 = vmatprep.subr.mxu0 %v271
    %1221 = vmatpush1.msra.mxu0 %v270
    %1222 = vmatprep.subr.mxu0 %v275
    %1223 = vmatpush1.msra.mxu0 %v274
    %1224 = vmatprep.subr.mxu0 %v279
    %1225 = vmatpush1.msra.mxu0 %v278
    %1226 = vmatprep.subr.mxu0 %v283
    %1227 = vmatpush1.msra.mxu0 %v282
    %1228 = vmatprep.subr.mxu0 %v287
    %1229 = vmatpush1.msra.mxu0 %v286
    %1230 = vmatprep.subr.mxu0 %v291
    %1231 = vmatpush1.msra.mxu0 %v290
    %1232 = vmatprep.subr.mxu0 %v295
    %1233 = vmatpush1.msra.mxu0 %v294
    %1234 = vmatprep.subr.mxu0 %v299
    %1235 = vmatpush1.msra.mxu0 %v298
    %1236 = vmatprep.subr.mxu0 %v303
    %1237 = vmatpush1.msra.mxu0 %v302
    %1238 = vmatprep.subr.mxu0 %v307
    %1239 = vmatpush1.msra.mxu0 %v306
    %1240 = vmatprep.subr.mxu0 %v311
    %1241 = vmatpush1.msra.mxu0 %v310
    %1242 = vmatprep.subr.mxu0 %v315
    %1243 = vmatpush1.msra.mxu0 %v314
    %1244 = vmatprep.subr.mxu0 %v319
    %1245 = vmatpush1.msra.mxu0 %v318
    %1246 = vmatprep.subr.mxu0 %v323
    %1247 = vmatpush1.msra.mxu0 %v322
    %1248 = vmatprep.subr.mxu0 %v327
    %1249 = vmatpush1.msra.mxu0 %v326
    %1250 = vmatprep.subr.mxu0 %v331
    %1251 = vmatpush1.msra.mxu0 %v330
    %1252 = vmatprep.subr.mxu0 %v335
    %1253 = vmatpush1.msra.mxu0 %v334
    %1254 = vmatprep.subr.mxu0 %v339
    %1255 = vmatpush1.msra.mxu0 %v338
    %1256 = vmatprep.subr.mxu0 %v343
    %1257 = vmatpush1.msra.mxu0 %v342
    %1258 = vmatprep.subr.mxu0 %v347
    %1259 = vmatpush1.msra.mxu0 %v346
    %1260 = vmatprep.subr.mxu0 %v351
    %1261 = vmatpush1.msra.mxu0 %v350
    %1262 = vmatprep.subr.mxu0 %v355
    %1263 = vmatpush1.msra.mxu0 %v354
    %1264 = vmatprep.subr.mxu0 %v359
    %1265 = vmatpush1.msra.mxu0 %v358
    %1266 = vmatprep.subr.mxu0 %v363
    %1267 = vmatpush1.msra.mxu0 %v362
    %1268 = vmatprep.subr.mxu0 %v367
    %1269 = vmatpush1.msra.mxu0 %v366
    %1270 = vmatprep.subr.mxu0 %v371
    %1271 = vmatpush1.msra.mxu0 %v370
    %1272 = vmatprep.subr.mxu0 %v375
    %1273 = vmatpush1.msra.mxu0 %v374
    %1274 = vmatprep.subr.mxu0 %v379
    %1275 = vmatpush1.msra.mxu0 %v378
    %1276 = vmatprep.mubr.f32.mxu0 %v117
    %1277 = vmatmul.mubr.f32.gmra.mrb[0].mxu0 %v116
    %v1278 = vpop.f32.mrb[0].mxu0
    %v1279 = vadd.f32 %v1208, %v1278
    %v1280 = vpop.f32.mrb[0].mxu0
    %v1281 = vadd.f32 %v1210, %v1280
    %1282 = vdwg.mxu0
    %1283 = vmatprep.subr.mxu0 %v383
    %1284 = vmatpush1.msra.mxu0 %v382
    %1285 = vmatprep.subr.mxu0 %v387
    %1286 = vmatpush1.msra.mxu0 %v386
    %1287 = vmatprep.subr.mxu0 %v391
    %1288 = vmatpush1.msra.mxu0 %v390
    %1289 = vmatprep.subr.mxu0 %v395
    %1290 = vmatpush1.msra.mxu0 %v394
    %1291 = vmatprep.subr.mxu0 %v399
    %1292 = vmatpush1.msra.mxu0 %v398
    %1293 = vmatprep.subr.mxu0 %v403
    %1294 = vmatpush1.msra.mxu0 %v402
    %1295 = vmatprep.subr.mxu0 %v407
    %1296 = vmatpush1.msra.mxu0 %v406
    %1297 = vmatprep.subr.mxu0 %v411
    %1298 = vmatpush1.msra.mxu0 %v410
    %1299 = vmatprep.subr.mxu0 %v415
    %1300 = vmatpush1.msra.mxu0 %v414
    %1301 = vmatprep.subr.mxu0 %v419
    %1302 = vmatpush1.msra.mxu0 %v418
    %1303 = vmatprep.subr.mxu0 %v423
    %1304 = vmatpush1.msra.mxu0 %v422
    %1305 = vmatprep.subr.mxu0 %v427
    %1306 = vmatpush1.msra.mxu0 %v426
    %1307 = vmatprep.subr.mxu0 %v431
    %1308 = vmatpush1.msra.mxu0 %v430
    %1309 = vmatprep.subr.mxu0 %v435
    %1310 = vmatpush1.msra.mxu0 %v434
    %1311 = vmatprep.subr.mxu0 %v439
    %1312 = vmatpush1.msra.mxu0 %v438
    %1313 = vmatprep.subr.mxu0 %v443
    %1314 = vmatpush1.msra.mxu0 %v442
    %1315 = vmatprep.subr.mxu0 %v447
    %1316 = vmatpush1.msra.mxu0 %v446
    %1317 = vmatprep.subr.mxu0 %v451
    %1318 = vmatpush1.msra.mxu0 %v450
    %1319 = vmatprep.subr.mxu0 %v455
    %1320 = vmatpush1.msra.mxu0 %v454
    %1321 = vmatprep.subr.mxu0 %v459
    %1322 = vmatpush1.msra.mxu0 %v458
    %1323 = vmatprep.subr.mxu0 %v463
    %1324 = vmatpush1.msra.mxu0 %v462
    %1325 = vmatprep.subr.mxu0 %v467
    %1326 = vmatpush1.msra.mxu0 %v466
    %1327 = vmatprep.subr.mxu0 %v471
    %1328 = vmatpush1.msra.mxu0 %v470
    %1329 = vmatprep.subr.mxu0 %v475
    %1330 = vmatpush1.msra.mxu0 %v474
    %1331 = vmatprep.subr.mxu0 %v479
    %1332 = vmatpush1.msra.mxu0 %v478
    %1333 = vmatprep.subr.mxu0 %v483
    %1334 = vmatpush1.msra.mxu0 %v482
    %1335 = vmatprep.subr.mxu0 %v487
    %1336 = vmatpush1.msra.mxu0 %v486
    %1337 = vmatprep.subr.mxu0 %v491
    %1338 = vmatpush1.msra.mxu0 %v490
    %1339 = vmatprep.subr.mxu0 %v495
    %1340 = vmatpush1.msra.mxu0 %v494
    %1341 = vmatprep.subr.mxu0 %v499
    %1342 = vmatpush1.msra.mxu0 %v498
    %1343 = vmatprep.subr.mxu0 %v503
    %1344 = vmatpush1.msra.mxu0 %v502
    %1345 = vmatprep.subr.mxu0 %v507
    %1346 = vmatpush1.msra.mxu0 %v506
    %1347 = vmatprep.mubr.f32.mxu0 %v119
    %1348 = vmatmul.mubr.f32.gmra.mrb[0].mxu0 %v118
    %v1349 = vpop.f32.mrb[0].mxu0
    %v1350 = vadd.f32 %v1279, %v1349
    %v1351 = vpop.f32.mrb[0].mxu0
    %v1352 = vadd.f32 %v1281, %v1351
    %1353 = vdwg.mxu0
    %1354 = vmatprep.subr.mxu0 %v511
    %1355 = vmatpush1.msra.mxu0 %v510
    %1356 = vmatprep.subr.mxu0 %v515
    %1357 = vmatpush1.msra.mxu0 %v514
    %1358 = vmatprep.subr.mxu0 %v519
    %1359 = vmatpush1.msra.mxu0 %v518
    %1360 = vmatprep.subr.mxu0 %v523
    %1361 = vmatpush1.msra.mxu0 %v522
    %1362 = vmatprep.subr.mxu0 %v527
    %1363 = vmatpush1.msra.mxu0 %v526
    %1364 = vmatprep.subr.mxu0 %v531
    %1365 = vmatpush1.msra.mxu0 %v530
    %1366 = vmatprep.subr.mxu0 %v535
    %1367 = vmatpush1.msra.mxu0 %v534
    %1368 = vmatprep.subr.mxu0 %v539
    %1369 = vmatpush1.msra.mxu0 %v538
    %1370 = vmatprep.subr.mxu0 %v543
    %1371 = vmatpush1.msra.mxu0 %v542
    %1372 = vmatprep.subr.mxu0 %v547
    %1373 = vmatpush1.msra.mxu0 %v546
    %1374 = vmatprep.subr.mxu0 %v551
    %1375 = vmatpush1.msra.mxu0 %v550
    %1376 = vmatprep.subr.mxu0 %v555
    %1377 = vmatpush1.msra.mxu0 %v554
    %1378 = vmatprep.subr.mxu0 %v559
    %1379 = vmatpush1.msra.mxu0 %v558
    %1380 = vmatprep.subr.mxu0 %v563
    %1381 = vmatpush1.msra.mxu0 %v562
    %1382 = vmatprep.subr.mxu0 %v567
    %1383 = vmatpush1.msra.mxu0 %v566
    %1384 = vmatprep.subr.mxu0 %v571
    %1385 = vmatpush1.msra.mxu0 %v570
    %1386 = vmatprep.subr.mxu0 %v575
    %1387 = vmatpush1.msra.mxu0 %v574
    %1388 = vmatprep.subr.mxu0 %v579
    %1389 = vmatpush1.msra.mxu0 %v578
    %1390 = vmatprep.subr.mxu0 %v583
    %1391 = vmatpush1.msra.mxu0 %v582
    %1392 = vmatprep.subr.mxu0 %v587
    %1393 = vmatpush1.msra.mxu0 %v586
    %1394 = vmatprep.subr.mxu0 %v591
    %1395 = vmatpush1.msra.mxu0 %v590
    %1396 = vmatprep.subr.mxu0 %v595
    %1397 = vmatpush1.msra.mxu0 %v594
    %1398 = vmatprep.subr.mxu0 %v599
    %1399 = vmatpush1.msra.mxu0 %v598
    %1400 = vmatprep.subr.mxu0 %v603
    %1401 = vmatpush1.msra.mxu0 %v602
    %1402 = vmatprep.subr.mxu0 %v607
    %1403 = vmatpush1.msra.mxu0 %v606
    %1404 = vmatprep.subr.mxu0 %v611
    %1405 = vmatpush1.msra.mxu0 %v610
    %1406 = vmatprep.subr.mxu0 %v615
    %1407 = vmatpush1.msra.mxu0 %v614
    %1408 = vmatprep.subr.mxu0 %v619
    %1409 = vmatpush1.msra.mxu0 %v618
    %1410 = vmatprep.subr.mxu0 %v623
    %1411 = vmatpush1.msra.mxu0 %v622
    %1412 = vmatprep.subr.mxu0 %v627
    %1413 = vmatpush1.msra.mxu0 %v626
    %1414 = vmatprep.subr.mxu0 %v631
    %1415 = vmatpush1.msra.mxu0 %v630
    %1416 = vmatprep.subr.mxu0 %v635
    %1417 = vmatpush1.msra.mxu0 %v634
    %1418 = vmatprep.mubr.f32.mxu0 %v121
    %1419 = vmatmul.mubr.f32.gmra.mrb[0].mxu0 %v120
    %v1420 = vpop.f32.mrb[0].mxu0
    %v1421 = vadd.f32 %v1350, %v1420
    %v1422 = vpop.f32.mrb[0].mxu0
    %v1423 = vadd.f32 %v1352, %v1422
    %1424 = vdwg.mxu0
    %1425 = vmatprep.subr.mxu0 %v639
    %1426 = vmatpush1.msra.mxu0 %v638
    %1427 = vmatprep.subr.mxu0 %v643
    %1428 = vmatpush1.msra.mxu0 %v642
    %1429 = vmatprep.subr.mxu0 %v647
    %1430 = vmatpush1.msra.mxu0 %v646
    %1431 = vmatprep.subr.mxu0 %v651
    %1432 = vmatpush1.msra.mxu0 %v650
    %1433 = vmatprep.subr.mxu0 %v655
    %1434 = vmatpush1.msra.mxu0 %v654
    %1435 = vmatprep.subr.mxu0 %v659
    %1436 = vmatpush1.msra.mxu0 %v658
    %1437 = vmatprep.subr.mxu0 %v663
    %1438 = vmatpush1.msra.mxu0 %v662
    %1439 = vmatprep.subr.mxu0 %v667
    %1440 = vmatpush1.msra.mxu0 %v666
    %1441 = vmatprep.subr.mxu0 %v671
    %1442 = vmatpush1.msra.mxu0 %v670
    %1443 = vmatprep.subr.mxu0 %v675
    %1444 = vmatpush1.msra.mxu0 %v674
    %1445 = vmatprep.subr.mxu0 %v679
    %1446 = vmatpush1.msra.mxu0 %v678
    %1447 = vmatprep.subr.mxu0 %v683
    %1448 = vmatpush1.msra.mxu0 %v682
    %1449 = vmatprep.subr.mxu0 %v687
    %1450 = vmatpush1.msra.mxu0 %v686
    %1451 = vmatprep.subr.mxu0 %v691
    %1452 = vmatpush1.msra.mxu0 %v690
    %1453 = vmatprep.subr.mxu0 %v695
    %1454 = vmatpush1.msra.mxu0 %v694
    %1455 = vmatprep.subr.mxu0 %v699
    %1456 = vmatpush1.msra.mxu0 %v698
    %1457 = vmatprep.subr.mxu0 %v703
    %1458 = vmatpush1.msra.mxu0 %v702
    %1459 = vmatprep.subr.mxu0 %v707
    %1460 = vmatpush1.msra.mxu0 %v706
    %1461 = vmatprep.subr.mxu0 %v711
    %1462 = vmatpush1.msra.mxu0 %v710
    %1463 = vmatprep.subr.mxu0 %v715
    %1464 = vmatpush1.msra.mxu0 %v714
    %1465 = vmatprep.subr.mxu0 %v719
    %1466 = vmatpush1.msra.mxu0 %v718
    %1467 = vmatprep.subr.mxu0 %v723
    %1468 = vmatpush1.msra.mxu0 %v722
    %1469 = vmatprep.subr.mxu0 %v727
    %1470 = vmatpush1.msra.mxu0 %v726
    %1471 = vmatprep.subr.mxu0 %v731
    %1472 = vmatpush1.msra.mxu0 %v730
    %1473 = vmatprep.subr.mxu0 %v735
    %1474 = vmatpush1.msra.mxu0 %v734
    %1475 = vmatprep.subr.mxu0 %v739
    %1476 = vmatpush1.msra.mxu0 %v738
    %1477 = vmatprep.subr.mxu0 %v743
    %1478 = vmatpush1.msra.mxu0 %v742
    %1479 = vmatprep.subr.mxu0 %v747
    %1480 = vmatpush1.msra.mxu0 %v746
    %1481 = vmatprep.subr.mxu0 %v751
    %1482 = vmatpush1.msra.mxu0 %v750
    %1483 = vmatprep.subr.mxu0 %v755
    %1484 = vmatpush1.msra.mxu0 %v754
    %1485 = vmatprep.subr.mxu0 %v759
    %1486 = vmatpush1.msra.mxu0 %v758
    %1487 = vmatprep.subr.mxu0 %v763
    %1488 = vmatpush1.msra.mxu0 %v762
    %1489 = vmatprep.mubr.f32.mxu0 %v123
    %1490 = vmatmul.mubr.f32.gmra.mrb[0].mxu0 %v122
    %v1491 = vpop.f32.mrb[0].mxu0
    %v1492 = vadd.f32 %v1421, %v1491
    %v1493 = vpop.f32.mrb[0].mxu0
    %v1494 = vadd.f32 %v1423, %v1493
    %1495 = vdwg.mxu0
    %v1496 = vtanh.pop %v1137
    %v1497 = vtanh.pop %v1139
    %v1498 = vtanh.pop %v1492
    %v1499 = vtanh.pop %v1494
    %v1500 = vld [vmem:[#allocation8] sm:$0xff]
    %v1501 = vld [vmem:[#allocation8 + $0x8] sm:$0xff]
    %v1502 = vld [vmem:[#allocation8 + $0x10] sm:$0xff]
    %v1503 = vld [vmem:[#allocation8 + $0x18] sm:$0xff]
    %v1504 = vld [vmem:[#allocation8 + $0x20] sm:$0xff]
    %v1505 = vld [vmem:[#allocation8 + $0x28] sm:$0xff]
    %v1506 = vld [vmem:[#allocation8 + $0x30] sm:$0xff]
    %v1507 = vld [vmem:[#allocation8 + $0x38] sm:$0xff]
    %v1508 = vld [vmem:[#allocation8 + $0x40] sm:$0xff]
    %v1509 = vld [vmem:[#allocation8 + $0x48] sm:$0xff]
    %v1510 = vld [vmem:[#allocation8 + $0x50] sm:$0xff]
    %v1511 = vld [vmem:[#allocation8 + $0x58] sm:$0xff]
    %v1512 = vld [vmem:[#allocation8 + $0x60] sm:$0xff]
    %v1513 = vld [vmem:[#allocation8 + $0x68] sm:$0xff]
    %v1514 = vld [vmem:[#allocation8 + $0x70] sm:$0xff]
    %v1515 = vld [vmem:[#allocation8 + $0x78] sm:$0xff]
    %v1516 = vld [vmem:[#allocation8 + $0x80] sm:$0xff]
    %v1517 = vld [vmem:[#allocation8 + $0x88] sm:$0xff]
    %v1518 = vld [vmem:[#allocation8 + $0x90] sm:$0xff]
    %v1519 = vld [vmem:[#allocation8 + $0x98] sm:$0xff]
    %v1520 = vld [vmem:[#allocation8 + $0xa0] sm:$0xff]
    %v1521 = vld [vmem:[#allocation8 + $0xa8] sm:$0xff]
    %v1522 = vld [vmem:[#allocation8 + $0xb0] sm:$0xff]
    %v1523 = vld [vmem:[#allocation8 + $0xb8] sm:$0xff]
    %v1524 = vld [vmem:[#allocation8 + $0xc0] sm:$0xff]
    %v1525 = vld [vmem:[#allocation8 + $0xc8] sm:$0xff]
    %v1526 = vld [vmem:[#allocation8 + $0xd0] sm:$0xff]
    %v1527 = vld [vmem:[#allocation8 + $0xd8] sm:$0xff]
    %v1528 = vld [vmem:[#allocation8 + $0xe0] sm:$0xff]
    %v1529 = vld [vmem:[#allocation8 + $0xe8] sm:$0xff]
    %v1530 = vld [vmem:[#allocation8 + $0xf0] sm:$0xff]
    %v1531 = vld [vmem:[#allocation8 + $0xf8] sm:$0xff]
    %v1532 = vld [vmem:[#allocation8 + $0x100] sm:$0xff]
    %v1533 = vld [vmem:[#allocation8 + $0x108] sm:$0xff]
    %v1534 = vld [vmem:[#allocation8 + $0x110] sm:$0xff]
    %v1535 = vld [vmem:[#allocation8 + $0x118] sm:$0xff]
    %v1536 = vld [vmem:[#allocation8 + $0x120] sm:$0xff]
    %v1537 = vld [vmem:[#allocation8 + $0x128] sm:$0xff]
    %v1538 = vld [vmem:[#allocation8 + $0x130] sm:$0xff]
    %v1539 = vld [vmem:[#allocation8 + $0x138] sm:$0xff]
    %v1540 = vld [vmem:[#allocation8 + $0x140] sm:$0xff]
    %v1541 = vld [vmem:[#allocation8 + $0x148] sm:$0xff]
    %v1542 = vld [vmem:[#allocation8 + $0x150] sm:$0xff]
    %v1543 = vld [vmem:[#allocation8 + $0x158] sm:$0xff]
    %v1544 = vld [vmem:[#allocation8 + $0x160] sm:$0xff]
    %v1545 = vld [vmem:[#allocation8 + $0x168] sm:$0xff]
    %v1546 = vld [vmem:[#allocation8 + $0x170] sm:$0xff]
    %v1547 = vld [vmem:[#allocation8 + $0x178] sm:$0xff]
    %v1548 = vld [vmem:[#allocation8 + $0x180] sm:$0xff]
    %v1549 = vld [vmem:[#allocation8 + $0x188] sm:$0xff]
    %v1550 = vld [vmem:[#allocation8 + $0x190] sm:$0xff]
    %v1551 = vld [vmem:[#allocation8 + $0x198] sm:$0xff]
    %v1552 = vld [vmem:[#allocation8 + $0x1a0] sm:$0xff]
    %v1553 = vld [vmem:[#allocation8 + $0x1a8] sm:$0xff]
    %v1554 = vld [vmem:[#allocation8 + $0x1b0] sm:$0xff]
    %v1555 = vld [vmem:[#allocation8 + $0x1b8] sm:$0xff]
    %v1556 = vld [vmem:[#allocation8 + $0x1c0] sm:$0xff]
    %v1557 = vld [vmem:[#allocation8 + $0x1c8] sm:$0xff]
    %v1558 = vld [vmem:[#allocation8 + $0x1d0] sm:$0xff]
    %v1559 = vld [vmem:[#allocation8 + $0x1d8] sm:$0xff]
    %v1560 = vld [vmem:[#allocation8 + $0x1e0] sm:$0xff]
    %v1561 = vld [vmem:[#allocation8 + $0x1e8] sm:$0xff]
    %v1562 = vld [vmem:[#allocation8 + $0x1f0] sm:$0xff]
    %v1563 = vld [vmem:[#allocation8 + $0x1f8] sm:$0xff]
    %v1564 = vld [vmem:[#allocation8 + $0x200] sm:$0xff]
    %v1565 = vld [vmem:[#allocation8 + $0x208] sm:$0xff]
    %v1566 = vld [vmem:[#allocation8 + $0x210] sm:$0xff]
    %v1567 = vld [vmem:[#allocation8 + $0x218] sm:$0xff]
    %v1568 = vld [vmem:[#allocation8 + $0x220] sm:$0xff]
    %v1569 = vld [vmem:[#allocation8 + $0x228] sm:$0xff]
    %v1570 = vld [vmem:[#allocation8 + $0x230] sm:$0xff]
    %v1571 = vld [vmem:[#allocation8 + $0x238] sm:$0xff]
    %v1572 = vld [vmem:[#allocation8 + $0x240] sm:$0xff]
    %v1573 = vld [vmem:[#allocation8 + $0x248] sm:$0xff]
    %v1574 = vld [vmem:[#allocation8 + $0x250] sm:$0xff]
    %v1575 = vld [vmem:[#allocation8 + $0x258] sm:$0xff]
    %v1576 = vld [vmem:[#allocation8 + $0x260] sm:$0xff]
    %v1577 = vld [vmem:[#allocation8 + $0x268] sm:$0xff]
    %v1578 = vld [vmem:[#allocation8 + $0x270] sm:$0xff]
    %v1579 = vld [vmem:[#allocation8 + $0x278] sm:$0xff]
    %v1580 = vld [vmem:[#allocation8 + $0x280] sm:$0xff]
    %v1581 = vld [vmem:[#allocation8 + $0x288] sm:$0xff]
    %v1582 = vld [vmem:[#allocation8 + $0x290] sm:$0xff]
    %v1583 = vld [vmem:[#allocation8 + $0x298] sm:$0xff]
    %v1584 = vld [vmem:[#allocation8 + $0x2a0] sm:$0xff]
    %v1585 = vld [vmem:[#allocation8 + $0x2a8] sm:$0xff]
    %v1586 = vld [vmem:[#allocation8 + $0x2b0] sm:$0xff]
    %v1587 = vld [vmem:[#allocation8 + $0x2b8] sm:$0xff]
    %v1588 = vld [vmem:[#allocation8 + $0x2c0] sm:$0xff]
    %v1589 = vld [vmem:[#allocation8 + $0x2c8] sm:$0xff]
    %v1590 = vld [vmem:[#allocation8 + $0x2d0] sm:$0xff]
    %v1591 = vld [vmem:[#allocation8 + $0x2d8] sm:$0xff]
    %v1592 = vld [vmem:[#allocation8 + $0x2e0] sm:$0xff]
    %v1593 = vld [vmem:[#allocation8 + $0x2e8] sm:$0xff]
    %v1594 = vld [vmem:[#allocation8 + $0x2f0] sm:$0xff]
    %v1595 = vld [vmem:[#allocation8 + $0x2f8] sm:$0xff]
    %v1596 = vld [vmem:[#allocation8 + $0x300] sm:$0xff]
    %v1597 = vld [vmem:[#allocation8 + $0x308] sm:$0xff]
    %v1598 = vld [vmem:[#allocation8 + $0x310] sm:$0xff]
    %v1599 = vld [vmem:[#allocation8 + $0x318] sm:$0xff]
    %v1600 = vld [vmem:[#allocation8 + $0x320] sm:$0xff]
    %v1601 = vld [vmem:[#allocation8 + $0x328] sm:$0xff]
    %v1602 = vld [vmem:[#allocation8 + $0x330] sm:$0xff]
    %v1603 = vld [vmem:[#allocation8 + $0x338] sm:$0xff]
    %v1604 = vld [vmem:[#allocation8 + $0x340] sm:$0xff]
    %v1605 = vld [vmem:[#allocation8 + $0x348] sm:$0xff]
    %v1606 = vld [vmem:[#allocation8 + $0x350] sm:$0xff]
    %v1607 = vld [vmem:[#allocation8 + $0x358] sm:$0xff]
    %v1608 = vld [vmem:[#allocation8 + $0x360] sm:$0xff]
    %v1609 = vld [vmem:[#allocation8 + $0x368] sm:$0xff]
    %v1610 = vld [vmem:[#allocation8 + $0x370] sm:$0xff]
    %v1611 = vld [vmem:[#allocation8 + $0x378] sm:$0xff]
    %v1612 = vld [vmem:[#allocation8 + $0x380] sm:$0xff]
    %v1613 = vld [vmem:[#allocation8 + $0x388] sm:$0xff]
    %v1614 = vld [vmem:[#allocation8 + $0x390] sm:$0xff]
    %v1615 = vld [vmem:[#allocation8 + $0x398] sm:$0xff]
    %v1616 = vld [vmem:[#allocation8 + $0x3a0] sm:$0xff]
    %v1617 = vld [vmem:[#allocation8 + $0x3a8] sm:$0xff]
    %v1618 = vld [vmem:[#allocation8 + $0x3b0] sm:$0xff]
    %v1619 = vld [vmem:[#allocation8 + $0x3b8] sm:$0xff]
    %v1620 = vld [vmem:[#allocation8 + $0x3c0] sm:$0xff]
    %v1621 = vld [vmem:[#allocation8 + $0x3c8] sm:$0xff]
    %v1622 = vld [vmem:[#allocation8 + $0x3d0] sm:$0xff]
    %v1623 = vld [vmem:[#allocation8 + $0x3d8] sm:$0xff]
    %v1624 = vld [vmem:[#allocation8 + $0x3e0] sm:$0xff]
    %v1625 = vld [vmem:[#allocation8 + $0x3e8] sm:$0xff]
    %v1626 = vld [vmem:[#allocation8 + $0x3f0] sm:$0xff]
    %v1627 = vld [vmem:[#allocation8 + $0x3f8] sm:$0xff]
    %v1628 = vld [vmem:[#allocation8 + $0x400] sm:$0xff]
    %v1629 = vld [vmem:[#allocation8 + $0x408] sm:$0xff]
    %v1630 = vld [vmem:[#allocation8 + $0x410] sm:$0xff]
    %v1631 = vld [vmem:[#allocation8 + $0x418] sm:$0xff]
    %v1632 = vld [vmem:[#allocation8 + $0x420] sm:$0xff]
    %v1633 = vld [vmem:[#allocation8 + $0x428] sm:$0xff]
    %v1634 = vld [vmem:[#allocation8 + $0x430] sm:$0xff]
    %v1635 = vld [vmem:[#allocation8 + $0x438] sm:$0xff]
    %v1636 = vld [vmem:[#allocation8 + $0x440] sm:$0xff]
    %v1637 = vld [vmem:[#allocation8 + $0x448] sm:$0xff]
    %v1638 = vld [vmem:[#allocation8 + $0x450] sm:$0xff]
    %v1639 = vld [vmem:[#allocation8 + $0x458] sm:$0xff]
    %v1640 = vld [vmem:[#allocation8 + $0x460] sm:$0xff]
    %v1641 = vld [vmem:[#allocation8 + $0x468] sm:$0xff]
    %v1642 = vld [vmem:[#allocation8 + $0x470] sm:$0xff]
    %v1643 = vld [vmem:[#allocation8 + $0x478] sm:$0xff]
    %v1644 = vld [vmem:[#allocation8 + $0x480] sm:$0xff]
    %v1645 = vld [vmem:[#allocation8 + $0x488] sm:$0xff]
    %v1646 = vld [vmem:[#allocation8 + $0x490] sm:$0xff]
    %v1647 = vld [vmem:[#allocation8 + $0x498] sm:$0xff]
    %v1648 = vld [vmem:[#allocation8 + $0x4a0] sm:$0xff]
    %v1649 = vld [vmem:[#allocation8 + $0x4a8] sm:$0xff]
    %v1650 = vld [vmem:[#allocation8 + $0x4b0] sm:$0xff]
    %v1651 = vld [vmem:[#allocation8 + $0x4b8] sm:$0xff]
    %v1652 = vld [vmem:[#allocation8 + $0x4c0] sm:$0xff]
    %v1653 = vld [vmem:[#allocation8 + $0x4c8] sm:$0xff]
    %v1654 = vld [vmem:[#allocation8 + $0x4d0] sm:$0xff]
    %v1655 = vld [vmem:[#allocation8 + $0x4d8] sm:$0xff]
    %v1656 = vld [vmem:[#allocation8 + $0x4e0] sm:$0xff]
    %v1657 = vld [vmem:[#allocation8 + $0x4e8] sm:$0xff]
    %v1658 = vld [vmem:[#allocation8 + $0x4f0] sm:$0xff]
    %v1659 = vld [vmem:[#allocation8 + $0x4f8] sm:$0xff]
    %v1660 = vld [vmem:[#allocation8 + $0x500] sm:$0xff]
    %v1661 = vld [vmem:[#allocation8 + $0x508] sm:$0xff]
    %v1662 = vld [vmem:[#allocation8 + $0x510] sm:$0xff]
    %v1663 = vld [vmem:[#allocation8 + $0x518] sm:$0xff]
    %v1664 = vld [vmem:[#allocation8 + $0x520] sm:$0xff]
    %v1665 = vld [vmem:[#allocation8 + $0x528] sm:$0xff]
    %v1666 = vld [vmem:[#allocation8 + $0x530] sm:$0xff]
    %v1667 = vld [vmem:[#allocation8 + $0x538] sm:$0xff]
    %v1668 = vld [vmem:[#allocation8 + $0x540] sm:$0xff]
    %v1669 = vld [vmem:[#allocation8 + $0x548] sm:$0xff]
    %v1670 = vld [vmem:[#allocation8 + $0x550] sm:$0xff]
    %v1671 = vld [vmem:[#allocation8 + $0x558] sm:$0xff]
    %v1672 = vld [vmem:[#allocation8 + $0x560] sm:$0xff]
    %v1673 = vld [vmem:[#allocation8 + $0x568] sm:$0xff]
    %v1674 = vld [vmem:[#allocation8 + $0x570] sm:$0xff]
    %v1675 = vld [vmem:[#allocation8 + $0x578] sm:$0xff]
    %v1676 = vld [vmem:[#allocation8 + $0x580] sm:$0xff]
    %v1677 = vld [vmem:[#allocation8 + $0x588] sm:$0xff]
    %v1678 = vld [vmem:[#allocation8 + $0x590] sm:$0xff]
    %v1679 = vld [vmem:[#allocation8 + $0x598] sm:$0xff]
    %v1680 = vld [vmem:[#allocation8 + $0x5a0] sm:$0xff]
    %v1681 = vld [vmem:[#allocation8 + $0x5a8] sm:$0xff]
    %v1682 = vld [vmem:[#allocation8 + $0x5b0] sm:$0xff]
    %v1683 = vld [vmem:[#allocation8 + $0x5b8] sm:$0xff]
    %v1684 = vld [vmem:[#allocation8 + $0x5c0] sm:$0xff]
    %v1685 = vld [vmem:[#allocation8 + $0x5c8] sm:$0xff]
    %v1686 = vld [vmem:[#allocation8 + $0x5d0] sm:$0xff]
    %v1687 = vld [vmem:[#allocation8 + $0x5d8] sm:$0xff]
    %v1688 = vld [vmem:[#allocation8 + $0x5e0] sm:$0xff]
    %v1689 = vld [vmem:[#allocation8 + $0x5e8] sm:$0xff]
    %v1690 = vld [vmem:[#allocation8 + $0x5f0] sm:$0xff]
    %v1691 = vld [vmem:[#allocation8 + $0x5f8] sm:$0xff]
    %v1692 = vld [vmem:[#allocation8 + $0x600] sm:$0xff]
    %v1693 = vld [vmem:[#allocation8 + $0x608] sm:$0xff]
    %v1694 = vld [vmem:[#allocation8 + $0x610] sm:$0xff]
    %v1695 = vld [vmem:[#allocation8 + $0x618] sm:$0xff]
    %v1696 = vld [vmem:[#allocation8 + $0x620] sm:$0xff]
    %v1697 = vld [vmem:[#allocation8 + $0x628] sm:$0xff]
    %v1698 = vld [vmem:[#allocation8 + $0x630] sm:$0xff]
    %v1699 = vld [vmem:[#allocation8 + $0x638] sm:$0xff]
    %v1700 = vld [vmem:[#allocation8 + $0x640] sm:$0xff]
    %v1701 = vld [vmem:[#allocation8 + $0x648] sm:$0xff]
    %v1702 = vld [vmem:[#allocation8 + $0x650] sm:$0xff]
    %v1703 = vld [vmem:[#allocation8 + $0x658] sm:$0xff]
    %v1704 = vld [vmem:[#allocation8 + $0x660] sm:$0xff]
    %v1705 = vld [vmem:[#allocation8 + $0x668] sm:$0xff]
    %v1706 = vld [vmem:[#allocation8 + $0x670] sm:$0xff]
    %v1707 = vld [vmem:[#allocation8 + $0x678] sm:$0xff]
    %v1708 = vld [vmem:[#allocation8 + $0x680] sm:$0xff]
    %v1709 = vld [vmem:[#allocation8 + $0x688] sm:$0xff]
    %v1710 = vld [vmem:[#allocation8 + $0x690] sm:$0xff]
    %v1711 = vld [vmem:[#allocation8 + $0x698] sm:$0xff]
    %v1712 = vld [vmem:[#allocation8 + $0x6a0] sm:$0xff]
    %v1713 = vld [vmem:[#allocation8 + $0x6a8] sm:$0xff]
    %v1714 = vld [vmem:[#allocation8 + $0x6b0] sm:$0xff]
    %v1715 = vld [vmem:[#allocation8 + $0x6b8] sm:$0xff]
    %v1716 = vld [vmem:[#allocation8 + $0x6c0] sm:$0xff]
    %v1717 = vld [vmem:[#allocation8 + $0x6c8] sm:$0xff]
    %v1718 = vld [vmem:[#allocation8 + $0x6d0] sm:$0xff]
    %v1719 = vld [vmem:[#allocation8 + $0x6d8] sm:$0xff]
    %v1720 = vld [vmem:[#allocation8 + $0x6e0] sm:$0xff]
    %v1721 = vld [vmem:[#allocation8 + $0x6e8] sm:$0xff]
    %v1722 = vld [vmem:[#allocation8 + $0x6f0] sm:$0xff]
    %v1723 = vld [vmem:[#allocation8 + $0x6f8] sm:$0xff]
    %v1724 = vld [vmem:[#allocation8 + $0x700] sm:$0xff]
    %v1725 = vld [vmem:[#allocation8 + $0x708] sm:$0xff]
    %v1726 = vld [vmem:[#allocation8 + $0x710] sm:$0xff]
    %v1727 = vld [vmem:[#allocation8 + $0x718] sm:$0xff]
    %v1728 = vld [vmem:[#allocation8 + $0x720] sm:$0xff]
    %v1729 = vld [vmem:[#allocation8 + $0x728] sm:$0xff]
    %v1730 = vld [vmem:[#allocation8 + $0x730] sm:$0xff]
    %v1731 = vld [vmem:[#allocation8 + $0x738] sm:$0xff]
    %v1732 = vld [vmem:[#allocation8 + $0x740] sm:$0xff]
    %v1733 = vld [vmem:[#allocation8 + $0x748] sm:$0xff]
    %v1734 = vld [vmem:[#allocation8 + $0x750] sm:$0xff]
    %v1735 = vld [vmem:[#allocation8 + $0x758] sm:$0xff]
    %v1736 = vld [vmem:[#allocation8 + $0x760] sm:$0xff]
    %v1737 = vld [vmem:[#allocation8 + $0x768] sm:$0xff]
    %v1738 = vld [vmem:[#allocation8 + $0x770] sm:$0xff]
    %v1739 = vld [vmem:[#allocation8 + $0x778] sm:$0xff]
    %v1740 = vld [vmem:[#allocation8 + $0x780] sm:$0xff]
    %v1741 = vld [vmem:[#allocation8 + $0x788] sm:$0xff]
    %v1742 = vld [vmem:[#allocation8 + $0x790] sm:$0xff]
    %v1743 = vld [vmem:[#allocation8 + $0x798] sm:$0xff]
    %v1744 = vld [vmem:[#allocation8 + $0x7a0] sm:$0xff]
    %v1745 = vld [vmem:[#allocation8 + $0x7a8] sm:$0xff]
    %v1746 = vld [vmem:[#allocation8 + $0x7b0] sm:$0xff]
    %v1747 = vld [vmem:[#allocation8 + $0x7b8] sm:$0xff]
    %v1748 = vld [vmem:[#allocation8 + $0x7c0] sm:$0xff]
    %v1749 = vld [vmem:[#allocation8 + $0x7c8] sm:$0xff]
    %v1750 = vld [vmem:[#allocation8 + $0x7d0] sm:$0xff]
    %v1751 = vld [vmem:[#allocation8 + $0x7d8] sm:$0xff]
    %v1752 = vld [vmem:[#allocation8 + $0x7e0] sm:$0xff]
    %v1753 = vld [vmem:[#allocation8 + $0x7e8] sm:$0xff]
    %v1754 = vld [vmem:[#allocation8 + $0x7f0] sm:$0xff]
    %v1755 = vld [vmem:[#allocation8 + $0x7f8] sm:$0xff]
    %v1756 = vld [vmem:[#allocation10] sm:$0xf]
    %v1758 = vlaneseq
    %v1759 = vshrl.u32 %v1758, 7
    %v1760 = vsub.s32 0, %v1759
    %v1761 = vrot.slane %v1756, %v1760
    %v1762 = vlaneseq
    %v1763 = vshrl.u32 %v1762, 7
    %v1764 = vsub.s32 1, %v1763
    %v1765 = vrot.slane %v1756, %v1764
    %v1766 = vlaneseq
    %v1767 = vshrl.u32 %v1766, 7
    %v1768 = vsub.s32 2, %v1767
    %v1769 = vrot.slane %v1756, %v1768
    %v1770 = vlaneseq
    %v1771 = vshrl.u32 %v1770, 7
    %v1772 = vsub.s32 3, %v1771
    %v1773 = vrot.slane %v1756, %v1772
    %1778 = vmatprep.subr.mxu0 %v1501
    %1779 = vmatpush1.msra.mxu0 %v1500
    %1780 = vmatprep.subr.mxu0 %v1505
    %1781 = vmatpush1.msra.mxu0 %v1504
    %1782 = vmatprep.subr.mxu0 %v1509
    %1783 = vmatpush1.msra.mxu0 %v1508
    %1784 = vmatprep.subr.mxu0 %v1513
    %1785 = vmatpush1.msra.mxu0 %v1512
    %1786 = vmatprep.subr.mxu0 %v1517
    %1787 = vmatpush1.msra.mxu0 %v1516
    %1788 = vmatprep.subr.mxu0 %v1521
    %1789 = vmatpush1.msra.mxu0 %v1520
    %1790 = vmatprep.subr.mxu0 %v1525
    %1791 = vmatpush1.msra.mxu0 %v1524
    %1792 = vmatprep.subr.mxu0 %v1529
    %1793 = vmatpush1.msra.mxu0 %v1528
    %1794 = vmatprep.subr.mxu0 %v1533
    %1795 = vmatpush1.msra.mxu0 %v1532
    %1796 = vmatprep.subr.mxu0 %v1537
    %1797 = vmatpush1.msra.mxu0 %v1536
    %1798 = vmatprep.subr.mxu0 %v1541
    %1799 = vmatpush1.msra.mxu0 %v1540
    %1800 = vmatprep.subr.mxu0 %v1545
    %1801 = vmatpush1.msra.mxu0 %v1544
    %1802 = vmatprep.subr.mxu0 %v1549
    %1803 = vmatpush1.msra.mxu0 %v1548
    %1804 = vmatprep.subr.mxu0 %v1553
    %1805 = vmatpush1.msra.mxu0 %v1552
    %1806 = vmatprep.subr.mxu0 %v1557
    %1807 = vmatpush1.msra.mxu0 %v1556
    %1808 = vmatprep.subr.mxu0 %v1561
    %1809 = vmatpush1.msra.mxu0 %v1560
    %1810 = vmatprep.subr.mxu0 %v1565
    %1811 = vmatpush1.msra.mxu0 %v1564
    %1812 = vmatprep.subr.mxu0 %v1569
    %1813 = vmatpush1.msra.mxu0 %v1568
    %1814 = vmatprep.subr.mxu0 %v1573
    %1815 = vmatpush1.msra.mxu0 %v1572
    %1816 = vmatprep.subr.mxu0 %v1577
    %1817 = vmatpush1.msra.mxu0 %v1576
    %1818 = vmatprep.subr.mxu0 %v1581
    %1819 = vmatpush1.msra.mxu0 %v1580
    %1820 = vmatprep.subr.mxu0 %v1585
    %1821 = vmatpush1.msra.mxu0 %v1584
    %1822 = vmatprep.subr.mxu0 %v1589
    %1823 = vmatpush1.msra.mxu0 %v1588
    %1824 = vmatprep.subr.mxu0 %v1593
    %1825 = vmatpush1.msra.mxu0 %v1592
    %1826 = vmatprep.subr.mxu0 %v1597
    %1827 = vmatpush1.msra.mxu0 %v1596
    %1828 = vmatprep.subr.mxu0 %v1601
    %1829 = vmatpush1.msra.mxu0 %v1600
    %1830 = vmatprep.subr.mxu0 %v1605
    %1831 = vmatpush1.msra.mxu0 %v1604
    %1832 = vmatprep.subr.mxu0 %v1609
    %1833 = vmatpush1.msra.mxu0 %v1608
    %1834 = vmatprep.subr.mxu0 %v1613
    %1835 = vmatpush1.msra.mxu0 %v1612
    %1836 = vmatprep.subr.mxu0 %v1617
    %1837 = vmatpush1.msra.mxu0 %v1616
    %1838 = vmatprep.subr.mxu0 %v1621
    %1839 = vmatpush1.msra.mxu0 %v1620
    %1840 = vmatprep.subr.mxu0 %v1625
    %1841 = vmatpush1.msra.mxu0 %v1624
    %1842 = vmatprep.mubr.f32.mxu0 %v1497
    %1843 = vmatmul.mubr.f32.gmra.mrb[0].mxu0 %v1496
    %v1844 = vpop.f32.mrb[0].mxu0
    %v1845 = vadd.f32 %v1761, %v1844
    %v1846 = vpop.f32.mrb[0].mxu0
    %v1847 = vadd.f32 %v1765, %v1846
    %1848 = vdwg.mxu0
    %1849 = vmatprep.subr.mxu0 %v1629
    %1850 = vmatpush1.msra.mxu0 %v1628
    %1851 = vmatprep.subr.mxu0 %v1633
    %1852 = vmatpush1.msra.mxu0 %v1632
    %1853 = vmatprep.subr.mxu0 %v1637
    %1854 = vmatpush1.msra.mxu0 %v1636
    %1855 = vmatprep.subr.mxu0 %v1641
    %1856 = vmatpush1.msra.mxu0 %v1640
    %1857 = vmatprep.subr.mxu0 %v1645
    %1858 = vmatpush1.msra.mxu0 %v1644
    %1859 = vmatprep.subr.mxu0 %v1649
    %1860 = vmatpush1.msra.mxu0 %v1648
    %1861 = vmatprep.subr.mxu0 %v1653
    %1862 = vmatpush1.msra.mxu0 %v1652
    %1863 = vmatprep.subr.mxu0 %v1657
    %1864 = vmatpush1.msra.mxu0 %v1656
    %1865 = vmatprep.subr.mxu0 %v1661
    %1866 = vmatpush1.msra.mxu0 %v1660
    %1867 = vmatprep.subr.mxu0 %v1665
    %1868 = vmatpush1.msra.mxu0 %v1664
    %1869 = vmatprep.subr.mxu0 %v1669
    %1870 = vmatpush1.msra.mxu0 %v1668
    %1871 = vmatprep.subr.mxu0 %v1673
    %1872 = vmatpush1.msra.mxu0 %v1672
    %1873 = vmatprep.subr.mxu0 %v1677
    %1874 = vmatpush1.msra.mxu0 %v1676
    %1875 = vmatprep.subr.mxu0 %v1681
    %1876 = vmatpush1.msra.mxu0 %v1680
    %1877 = vmatprep.subr.mxu0 %v1685
    %1878 = vmatpush1.msra.mxu0 %v1684
    %1879 = vmatprep.subr.mxu0 %v1689
    %1880 = vmatpush1.msra.mxu0 %v1688
    %1881 = vmatprep.subr.mxu0 %v1693
    %1882 = vmatpush1.msra.mxu0 %v1692
    %1883 = vmatprep.subr.mxu0 %v1697
    %1884 = vmatpush1.msra.mxu0 %v1696
    %1885 = vmatprep.subr.mxu0 %v1701
    %1886 = vmatpush1.msra.mxu0 %v1700
    %1887 = vmatprep.subr.mxu0 %v1705
    %1888 = vmatpush1.msra.mxu0 %v1704
    %1889 = vmatprep.subr.mxu0 %v1709
    %1890 = vmatpush1.msra.mxu0 %v1708
    %1891 = vmatprep.subr.mxu0 %v1713
    %1892 = vmatpush1.msra.mxu0 %v1712
    %1893 = vmatprep.subr.mxu0 %v1717
    %1894 = vmatpush1.msra.mxu0 %v1716
    %1895 = vmatprep.subr.mxu0 %v1721
    %1896 = vmatpush1.msra.mxu0 %v1720
    %1897 = vmatprep.subr.mxu0 %v1725
    %1898 = vmatpush1.msra.mxu0 %v1724
    %1899 = vmatprep.subr.mxu0 %v1729
    %1900 = vmatpush1.msra.mxu0 %v1728
    %1901 = vmatprep.subr.mxu0 %v1733
    %1902 = vmatpush1.msra.mxu0 %v1732
    %1903 = vmatprep.subr.mxu0 %v1737
    %1904 = vmatpush1.msra.mxu0 %v1736
    %1905 = vmatprep.subr.mxu0 %v1741
    %1906 = vmatpush1.msra.mxu0 %v1740
    %1907 = vmatprep.subr.mxu0 %v1745
    %1908 = vmatpush1.msra.mxu0 %v1744
    %1909 = vmatprep.subr.mxu0 %v1749
    %1910 = vmatpush1.msra.mxu0 %v1748
    %1911 = vmatprep.subr.mxu0 %v1753
    %1912 = vmatpush1.msra.mxu0 %v1752
    %1913 = vmatprep.mubr.f32.mxu0 %v1499
    %1914 = vmatmul.mubr.f32.gmra.mrb[0].mxu0 %v1498
    %v1915 = vpop.f32.mrb[0].mxu0
    %v1916 = vadd.f32 %v1845, %v1915
    %v1917 = vpop.f32.mrb[0].mxu0
    %v1918 = vadd.f32 %v1847, %v1917
    %1919 = vdwg.mxu0
    %1920 = vmatprep.subr.mxu0 %v1503
    %1921 = vmatpush1.msra.mxu0 %v1502
    %1922 = vmatprep.subr.mxu0 %v1507
    %1923 = vmatpush1.msra.mxu0 %v1506
    %1924 = vmatprep.subr.mxu0 %v1511
    %1925 = vmatpush1.msra.mxu0 %v1510
    %1926 = vmatprep.subr.mxu0 %v1515
    %1927 = vmatpush1.msra.mxu0 %v1514
    %1928 = vmatprep.subr.mxu0 %v1519
    %1929 = vmatpush1.msra.mxu0 %v1518
    %1930 = vmatprep.subr.mxu0 %v1523
    %1931 = vmatpush1.msra.mxu0 %v1522
    %1932 = vmatprep.subr.mxu0 %v1527
    %1933 = vmatpush1.msra.mxu0 %v1526
    %1934 = vmatprep.subr.mxu0 %v1531
    %1935 = vmatpush1.msra.mxu0 %v1530
    %1936 = vmatprep.subr.mxu0 %v1535
    %1937 = vmatpush1.msra.mxu0 %v1534
    %1938 = vmatprep.subr.mxu0 %v1539
    %1939 = vmatpush1.msra.mxu0 %v1538
    %1940 = vmatprep.subr.mxu0 %v1543
    %1941 = vmatpush1.msra.mxu0 %v1542
    %1942 = vmatprep.subr.mxu0 %v1547
    %1943 = vmatpush1.msra.mxu0 %v1546
    %1944 = vmatprep.subr.mxu0 %v1551
    %1945 = vmatpush1.msra.mxu0 %v1550
    %1946 = vmatprep.subr.mxu0 %v1555
    %1947 = vmatpush1.msra.mxu0 %v1554
    %1948 = vmatprep.subr.mxu0 %v1559
    %1949 = vmatpush1.msra.mxu0 %v1558
    %1950 = vmatprep.subr.mxu0 %v1563
    %1951 = vmatpush1.msra.mxu0 %v1562
    %1952 = vmatprep.subr.mxu0 %v1567
    %1953 = vmatpush1.msra.mxu0 %v1566
    %1954 = vmatprep.subr.mxu0 %v1571
    %1955 = vmatpush1.msra.mxu0 %v1570
    %1956 = vmatprep.subr.mxu0 %v1575
    %1957 = vmatpush1.msra.mxu0 %v1574
    %1958 = vmatprep.subr.mxu0 %v1579
    %1959 = vmatpush1.msra.mxu0 %v1578
    %1960 = vmatprep.subr.mxu0 %v1583
    %1961 = vmatpush1.msra.mxu0 %v1582
    %1962 = vmatprep.subr.mxu0 %v1587
    %1963 = vmatpush1.msra.mxu0 %v1586
    %1964 = vmatprep.subr.mxu0 %v1591
    %1965 = vmatpush1.msra.mxu0 %v1590
    %1966 = vmatprep.subr.mxu0 %v1595
    %1967 = vmatpush1.msra.mxu0 %v1594
    %1968 = vmatprep.subr.mxu0 %v1599
    %1969 = vmatpush1.msra.mxu0 %v1598
    %1970 = vmatprep.subr.mxu0 %v1603
    %1971 = vmatpush1.msra.mxu0 %v1602
    %1972 = vmatprep.subr.mxu0 %v1607
    %1973 = vmatpush1.msra.mxu0 %v1606
    %1974 = vmatprep.subr.mxu0 %v1611
    %1975 = vmatpush1.msra.mxu0 %v1610
    %1976 = vmatprep.subr.mxu0 %v1615
    %1977 = vmatpush1.msra.mxu0 %v1614
    %1978 = vmatprep.subr.mxu0 %v1619
    %1979 = vmatpush1.msra.mxu0 %v1618
    %1980 = vmatprep.subr.mxu0 %v1623
    %1981 = vmatpush1.msra.mxu0 %v1622
    %1982 = vmatprep.subr.mxu0 %v1627
    %1983 = vmatpush1.msra.mxu0 %v1626
    %1984 = vmatprep.mubr.f32.mxu0 %v1497
    %1985 = vmatmul.mubr.f32.gmra.mrb[0].mxu0 %v1496
    %v1986 = vpop.f32.mrb[0].mxu0
    %v1987 = vadd.f32 %v1769, %v1986
    %v1988 = vpop.f32.mrb[0].mxu0
    %v1989 = vadd.f32 %v1773, %v1988
    %1990 = vdwg.mxu0
    %1991 = vmatprep.subr.mxu0 %v1631
    %1992 = vmatpush1.msra.mxu0 %v1630
    %1993 = vmatprep.subr.mxu0 %v1635
    %1994 = vmatpush1.msra.mxu0 %v1634
    %1995 = vmatprep.subr.mxu0 %v1639
    %1996 = vmatpush1.msra.mxu0 %v1638
    %1997 = vmatprep.subr.mxu0 %v1643
    %1998 = vmatpush1.msra.mxu0 %v1642
    %1999 = vmatprep.subr.mxu0 %v1647
    %2000 = vmatpush1.msra.mxu0 %v1646
    %2001 = vmatprep.subr.mxu0 %v1651
    %2002 = vmatpush1.msra.mxu0 %v1650
    %2003 = vmatprep.subr.mxu0 %v1655
    %2004 = vmatpush1.msra.mxu0 %v1654
    %2005 = vmatprep.subr.mxu0 %v1659
    %2006 = vmatpush1.msra.mxu0 %v1658
    %2007 = vmatprep.subr.mxu0 %v1663
    %2008 = vmatpush1.msra.mxu0 %v1662
    %2009 = vmatprep.subr.mxu0 %v1667
    %2010 = vmatpush1.msra.mxu0 %v1666
    %2011 = vmatprep.subr.mxu0 %v1671
    %2012 = vmatpush1.msra.mxu0 %v1670
    %2013 = vmatprep.subr.mxu0 %v1675
    %2014 = vmatpush1.msra.mxu0 %v1674
    %2015 = vmatprep.subr.mxu0 %v1679
    %2016 = vmatpush1.msra.mxu0 %v1678
    %2017 = vmatprep.subr.mxu0 %v1683
    %2018 = vmatpush1.msra.mxu0 %v1682
    %2019 = vmatprep.subr.mxu0 %v1687
    %2020 = vmatpush1.msra.mxu0 %v1686
    %2021 = vmatprep.subr.mxu0 %v1691
    %2022 = vmatpush1.msra.mxu0 %v1690
    %2023 = vmatprep.subr.mxu0 %v1695
    %2024 = vmatpush1.msra.mxu0 %v1694
    %2025 = vmatprep.subr.mxu0 %v1699
    %2026 = vmatpush1.msra.mxu0 %v1698
    %2027 = vmatprep.subr.mxu0 %v1703
    %2028 = vmatpush1.msra.mxu0 %v1702
    %2029 = vmatprep.subr.mxu0 %v1707
    %2030 = vmatpush1.msra.mxu0 %v1706
    %2031 = vmatprep.subr.mxu0 %v1711
    %2032 = vmatpush1.msra.mxu0 %v1710
    %2033 = vmatprep.subr.mxu0 %v1715
    %2034 = vmatpush1.msra.mxu0 %v1714
    %2035 = vmatprep.subr.mxu0 %v1719
    %2036 = vmatpush1.msra.mxu0 %v1718
    %2037 = vmatprep.subr.mxu0 %v1723
    %2038 = vmatpush1.msra.mxu0 %v1722
    %2039 = vmatprep.subr.mxu0 %v1727
    %2040 = vmatpush1.msra.mxu0 %v1726
    %2041 = vmatprep.subr.mxu0 %v1731
    %2042 = vmatpush1.msra.mxu0 %v1730
    %2043 = vmatprep.subr.mxu0 %v1735
    %2044 = vmatpush1.msra.mxu0 %v1734
    %2045 = vmatprep.subr.mxu0 %v1739
    %2046 = vmatpush1.msra.mxu0 %v1738
    %2047 = vmatprep.subr.mxu0 %v1743
    %2048 = vmatpush1.msra.mxu0 %v1742
    %2049 = vmatprep.subr.mxu0 %v1747
    %2050 = vmatpush1.msra.mxu0 %v1746
    %2051 = vmatprep.subr.mxu0 %v1751
    %2052 = vmatpush1.msra.mxu0 %v1750
    %2053 = vmatprep.subr.mxu0 %v1755
    %2054 = vmatpush1.msra.mxu0 %v1754
    %2055 = vmatprep.mubr.f32.mxu0 %v1499
    %2056 = vmatmul.mubr.f32.gmra.mrb[0].mxu0 %v1498
    %v2057 = vpop.f32.mrb[0].mxu0
    %v2058 = vadd.f32 %v1987, %v2057
    %v2059 = vpop.f32.mrb[0].mxu0
    %v2060 = vadd.f32 %v1989, %v2059
    %2061 = vdwg.mxu0
    %v2062 = vtanh.pop %v1916
    %v2063 = vtanh.pop %v1918
    %v2064 = vtanh.pop %v2058
    %v2065 = vtanh.pop %v2060
    %v2066 = vld [vmem:[#allocation11] sm:$0xff]
    %v2067 = vld [vmem:[#allocation11 + $0x8] sm:$0xff]
    %v2068 = vld [vmem:[#allocation11 + $0x10] sm:$0xff]
    %v2069 = vld [vmem:[#allocation11 + $0x18] sm:$0xff]
    %v2070 = vld [vmem:[#allocation11 + $0x20] sm:$0xff]
    %v2071 = vld [vmem:[#allocation11 + $0x28] sm:$0xff]
    %v2072 = vld [vmem:[#allocation11 + $0x30] sm:$0xff]
    %v2073 = vld [vmem:[#allocation11 + $0x38] sm:$0xff]
    %v2074 = vld [vmem:[#allocation11 + $0x40] sm:$0xff]
    %v2075 = vld [vmem:[#allocation11 + $0x48] sm:$0xff]
    %v2076 = vld [vmem:[#allocation11 + $0x50] sm:$0xff]
    %v2077 = vld [vmem:[#allocation11 + $0x58] sm:$0xff]
    %v2078 = vld [vmem:[#allocation11 + $0x60] sm:$0xff]
    %v2079 = vld [vmem:[#allocation11 + $0x68] sm:$0xff]
    %v2080 = vld [vmem:[#allocation11 + $0x70] sm:$0xff]
    %v2081 = vld [vmem:[#allocation11 + $0x78] sm:$0xff]
    %v2082 = vld [vmem:[#allocation11 + $0x80] sm:$0xff]
    %v2083 = vld [vmem:[#allocation11 + $0x88] sm:$0xff]
    %v2084 = vld [vmem:[#allocation11 + $0x90] sm:$0xff]
    %v2085 = vld [vmem:[#allocation11 + $0x98] sm:$0xff]
    %v2086 = vld [vmem:[#allocation11 + $0xa0] sm:$0xff]
    %v2087 = vld [vmem:[#allocation11 + $0xa8] sm:$0xff]
    %v2088 = vld [vmem:[#allocation11 + $0xb0] sm:$0xff]
    %v2089 = vld [vmem:[#allocation11 + $0xb8] sm:$0xff]
    %v2090 = vld [vmem:[#allocation11 + $0xc0] sm:$0xff]
    %v2091 = vld [vmem:[#allocation11 + $0xc8] sm:$0xff]
    %v2092 = vld [vmem:[#allocation11 + $0xd0] sm:$0xff]
    %v2093 = vld [vmem:[#allocation11 + $0xd8] sm:$0xff]
    %v2094 = vld [vmem:[#allocation11 + $0xe0] sm:$0xff]
    %v2095 = vld [vmem:[#allocation11 + $0xe8] sm:$0xff]
    %v2096 = vld [vmem:[#allocation11 + $0xf0] sm:$0xff]
    %v2097 = vld [vmem:[#allocation11 + $0xf8] sm:$0xff]
    %v2098 = vld [vmem:[#allocation11 + $0x100] sm:$0xff]
    %v2099 = vld [vmem:[#allocation11 + $0x108] sm:$0xff]
    %v2100 = vld [vmem:[#allocation11 + $0x110] sm:$0xff]
    %v2101 = vld [vmem:[#allocation11 + $0x118] sm:$0xff]
    %v2102 = vld [vmem:[#allocation11 + $0x120] sm:$0xff]
    %v2103 = vld [vmem:[#allocation11 + $0x128] sm:$0xff]
    %v2104 = vld [vmem:[#allocation11 + $0x130] sm:$0xff]
    %v2105 = vld [vmem:[#allocation11 + $0x138] sm:$0xff]
    %v2106 = vld [vmem:[#allocation11 + $0x140] sm:$0xff]
    %v2107 = vld [vmem:[#allocation11 + $0x148] sm:$0xff]
    %v2108 = vld [vmem:[#allocation11 + $0x150] sm:$0xff]
    %v2109 = vld [vmem:[#allocation11 + $0x158] sm:$0xff]
    %v2110 = vld [vmem:[#allocation11 + $0x160] sm:$0xff]
    %v2111 = vld [vmem:[#allocation11 + $0x168] sm:$0xff]
    %v2112 = vld [vmem:[#allocation11 + $0x170] sm:$0xff]
    %v2113 = vld [vmem:[#allocation11 + $0x178] sm:$0xff]
    %v2114 = vld [vmem:[#allocation11 + $0x180] sm:$0xff]
    %v2115 = vld [vmem:[#allocation11 + $0x188] sm:$0xff]
    %v2116 = vld [vmem:[#allocation11 + $0x190] sm:$0xff]
    %v2117 = vld [vmem:[#allocation11 + $0x198] sm:$0xff]
    %v2118 = vld [vmem:[#allocation11 + $0x1a0] sm:$0xff]
    %v2119 = vld [vmem:[#allocation11 + $0x1a8] sm:$0xff]
    %v2120 = vld [vmem:[#allocation11 + $0x1b0] sm:$0xff]
    %v2121 = vld [vmem:[#allocation11 + $0x1b8] sm:$0xff]
    %v2122 = vld [vmem:[#allocation11 + $0x1c0] sm:$0xff]
    %v2123 = vld [vmem:[#allocation11 + $0x1c8] sm:$0xff]
    %v2124 = vld [vmem:[#allocation11 + $0x1d0] sm:$0xff]
    %v2125 = vld [vmem:[#allocation11 + $0x1d8] sm:$0xff]
    %v2126 = vld [vmem:[#allocation11 + $0x1e0] sm:$0xff]
    %v2127 = vld [vmem:[#allocation11 + $0x1e8] sm:$0xff]
    %v2128 = vld [vmem:[#allocation11 + $0x1f0] sm:$0xff]
    %v2129 = vld [vmem:[#allocation11 + $0x1f8] sm:$0xff]
    %v2130 = vld [vmem:[#allocation13] sm:$0x1]
    %v2132 = vlaneseq
    %v2133 = vshrl.u32 %v2132, 7
    %v2134 = vsub.s32 0, %v2133
    %v2135 = vrot.slane %v2130, %v2134
    %2137 = vmatprep.subr.mxu0 0.0
    %2138 = vmatpush1.msra.mxu0 %v2066
    %2139 = vmatprep.subr.mxu0 0.0
    %2140 = vmatpush1.msra.mxu0 %v2067
    %2141 = vmatprep.subr.mxu0 0.0
    %2142 = vmatpush1.msra.mxu0 %v2068
    %2143 = vmatprep.subr.mxu0 0.0
    %2144 = vmatpush1.msra.mxu0 %v2069
    %2145 = vmatprep.subr.mxu0 0.0
    %2146 = vmatpush1.msra.mxu0 %v2070
    %2147 = vmatprep.subr.mxu0 0.0
    %2148 = vmatpush1.msra.mxu0 %v2071
    %2149 = vmatprep.subr.mxu0 0.0
    %2150 = vmatpush1.msra.mxu0 %v2072
    %2151 = vmatprep.subr.mxu0 0.0
    %2152 = vmatpush1.msra.mxu0 %v2073
    %2153 = vmatprep.subr.mxu0 0.0
    %2154 = vmatpush1.msra.mxu0 %v2074
    %2155 = vmatprep.subr.mxu0 0.0
    %2156 = vmatpush1.msra.mxu0 %v2075
    %2157 = vmatprep.subr.mxu0 0.0
    %2158 = vmatpush1.msra.mxu0 %v2076
    %2159 = vmatprep.subr.mxu0 0.0
    %2160 = vmatpush1.msra.mxu0 %v2077
    %2161 = vmatprep.subr.mxu0 0.0
    %2162 = vmatpush1.msra.mxu0 %v2078
    %2163 = vmatprep.subr.mxu0 0.0
    %2164 = vmatpush1.msra.mxu0 %v2079
    %2165 = vmatprep.subr.mxu0 0.0
    %2166 = vmatpush1.msra.mxu0 %v2080
    %2167 = vmatprep.subr.mxu0 0.0
    %2168 = vmatpush1.msra.mxu0 %v2081
    %2169 = vmatprep.subr.mxu0 0.0
    %2170 = vmatpush1.msra.mxu0 %v2082
    %2171 = vmatprep.subr.mxu0 0.0
    %2172 = vmatpush1.msra.mxu0 %v2083
    %2173 = vmatprep.subr.mxu0 0.0
    %2174 = vmatpush1.msra.mxu0 %v2084
    %2175 = vmatprep.subr.mxu0 0.0
    %2176 = vmatpush1.msra.mxu0 %v2085
    %2177 = vmatprep.subr.mxu0 0.0
    %2178 = vmatpush1.msra.mxu0 %v2086
    %2179 = vmatprep.subr.mxu0 0.0
    %2180 = vmatpush1.msra.mxu0 %v2087
    %2181 = vmatprep.subr.mxu0 0.0
    %2182 = vmatpush1.msra.mxu0 %v2088
    %2183 = vmatprep.subr.mxu0 0.0
    %2184 = vmatpush1.msra.mxu0 %v2089
    %2185 = vmatprep.subr.mxu0 0.0
    %2186 = vmatpush1.msra.mxu0 %v2090
    %2187 = vmatprep.subr.mxu0 0.0
    %2188 = vmatpush1.msra.mxu0 %v2091
    %2189 = vmatprep.subr.mxu0 0.0
    %2190 = vmatpush1.msra.mxu0 %v2092
    %2191 = vmatprep.subr.mxu0 0.0
    %2192 = vmatpush1.msra.mxu0 %v2093
    %2193 = vmatprep.subr.mxu0 0.0
    %2194 = vmatpush1.msra.mxu0 %v2094
    %2195 = vmatprep.subr.mxu0 0.0
    %2196 = vmatpush1.msra.mxu0 %v2095
    %2197 = vmatprep.subr.mxu0 0.0
    %2198 = vmatpush1.msra.mxu0 %v2096
    %2199 = vmatprep.subr.mxu0 0.0
    %2200 = vmatpush1.msra.mxu0 %v2097
    %2201 = vmatprep.mubr.f32.mxu0 %v2063
    %2202 = vmatmul.mubr.f32.gmra.mrb[0].mxu0 %v2062
    %v2203 = vpop.f32.mrb[0].mxu0
    %v2204 = vadd.f32 %v2135, %v2203
    %v2205 = vpop.f32.mrb[0].mxu0
    %2206 = vdwg.mxu0
    %2207 = vmatprep.subr.mxu0 0.0
    %2208 = vmatpush1.msra.mxu0 %v2098
    %2209 = vmatprep.subr.mxu0 0.0
    %2210 = vmatpush1.msra.mxu0 %v2099
    %2211 = vmatprep.subr.mxu0 0.0
    %2212 = vmatpush1.msra.mxu0 %v2100
    %2213 = vmatprep.subr.mxu0 0.0
    %2214 = vmatpush1.msra.mxu0 %v2101
    %2215 = vmatprep.subr.mxu0 0.0
    %2216 = vmatpush1.msra.mxu0 %v2102
    %2217 = vmatprep.subr.mxu0 0.0
    %2218 = vmatpush1.msra.mxu0 %v2103
    %2219 = vmatprep.subr.mxu0 0.0
    %2220 = vmatpush1.msra.mxu0 %v2104
    %2221 = vmatprep.subr.mxu0 0.0
    %2222 = vmatpush1.msra.mxu0 %v2105
    %2223 = vmatprep.subr.mxu0 0.0
    %2224 = vmatpush1.msra.mxu0 %v2106
    %2225 = vmatprep.subr.mxu0 0.0
    %2226 = vmatpush1.msra.mxu0 %v2107
    %2227 = vmatprep.subr.mxu0 0.0
    %2228 = vmatpush1.msra.mxu0 %v2108
    %2229 = vmatprep.subr.mxu0 0.0
    %2230 = vmatpush1.msra.mxu0 %v2109
    %2231 = vmatprep.subr.mxu0 0.0
    %2232 = vmatpush1.msra.mxu0 %v2110
    %2233 = vmatprep.subr.mxu0 0.0
    %2234 = vmatpush1.msra.mxu0 %v2111
    %2235 = vmatprep.subr.mxu0 0.0
    %2236 = vmatpush1.msra.mxu0 %v2112
    %2237 = vmatprep.subr.mxu0 0.0
    %2238 = vmatpush1.msra.mxu0 %v2113
    %2239 = vmatprep.subr.mxu0 0.0
    %2240 = vmatpush1.msra.mxu0 %v2114
    %2241 = vmatprep.subr.mxu0 0.0
    %2242 = vmatpush1.msra.mxu0 %v2115
    %2243 = vmatprep.subr.mxu0 0.0
    %2244 = vmatpush1.msra.mxu0 %v2116
    %2245 = vmatprep.subr.mxu0 0.0
    %2246 = vmatpush1.msra.mxu0 %v2117
    %2247 = vmatprep.subr.mxu0 0.0
    %2248 = vmatpush1.msra.mxu0 %v2118
    %2249 = vmatprep.subr.mxu0 0.0
    %2250 = vmatpush1.msra.mxu0 %v2119
    %2251 = vmatprep.subr.mxu0 0.0
    %2252 = vmatpush1.msra.mxu0 %v2120
    %2253 = vmatprep.subr.mxu0 0.0
    %2254 = vmatpush1.msra.mxu0 %v2121
    %2255 = vmatprep.subr.mxu0 0.0
    %2256 = vmatpush1.msra.mxu0 %v2122
    %2257 = vmatprep.subr.mxu0 0.0
    %2258 = vmatpush1.msra.mxu0 %v2123
    %2259 = vmatprep.subr.mxu0 0.0
    %2260 = vmatpush1.msra.mxu0 %v2124
    %2261 = vmatprep.subr.mxu0 0.0
    %2262 = vmatpush1.msra.mxu0 %v2125
    %2263 = vmatprep.subr.mxu0 0.0
    %2264 = vmatpush1.msra.mxu0 %v2126
    %2265 = vmatprep.subr.mxu0 0.0
    %2266 = vmatpush1.msra.mxu0 %v2127
    %2267 = vmatprep.subr.mxu0 0.0
    %2268 = vmatpush1.msra.mxu0 %v2128
    %2269 = vmatprep.subr.mxu0 0.0
    %2270 = vmatpush1.msra.mxu0 %v2129
    %2271 = vmatprep.mubr.f32.mxu0 %v2065
    %2272 = vmatmul.mubr.f32.gmra.mrb[0].mxu0 %v2064
    %v2273 = vpop.f32.mrb[0].mxu0
    %v2274 = vadd.f32 %v2204, %v2273
    %v2275 = vpop.f32.mrb[0].mxu0
    %2276 = vdwg.mxu0
    %2277 = vst [vmem:[#allocation14] sm:$0xff] %v2274
    // Predicated region
    $region58: #{tpu_custom_call.1} parent=1 // pred_check
      _
    $region59: #{tpu_custom_call.1} parent=1 // pred_check_branch
      %2279 = sbr.rel (0) target = $region61
    $region60: #{tpu_custom_call.1} parent=1 // pred_region
      %s2281 = ssub.s32 128, 128
      %2282 = vsyncadd [#allocation4], %s2281
      %s2284 = sshll.u32 [#allocation14], 4
      %s2285 = int_to_ptr.vmem [resolvable:$true] %s2284
      %2287 = dma.vmem_to_hbm [thread:$0]  %s2285, 128, %s7, [#allocation4]
    $region61: #{tpu_custom_call.1} parent=1 // pred_fallthru
      _
    // Predicated region
    $region62: #{tpu_custom_call.1} parent=1 // pred_check
      _
    $region63: #{tpu_custom_call.1} parent=1 // pred_check_branch
      %2289 = sbr.rel (0) target = $region65
    $region64: #{tpu_custom_call.1} parent=1 // pred_region
      %2290 = dma.done [#allocation4], 128
    $region65: #{tpu_custom_call.1} parent=1 // pred_fallthru
      _
    %2291 = vsyncpa [#allocation3], 1
    %2292 = vsyncpa [#allocation6], 1
    %2293 = vsyncpa [#allocation9], 1
    %2294 = vsyncpa [#allocation12], 1
    %2295 = vsyncpa [#allocation4], 1

</llo_original>
